<compile_context>
chip_gen: v7x
topology: tpu7x:2x2x1
jax: 0.10.0
libtpu: 0.0.40
codegen_flags: <defaults>
</compile_context>

<pallas_src>
import jax
import jax.numpy as jnp
from jax.experimental import pallas as pl
from jax.experimental.pallas import tpu as pltpu


def _round_up(a, m):
    return (a + m - 1) // m * m


def make_meta_unit_kernel(layer_specs, unique_dims, bias_offsets, compute_dtype):
    """layer_specs: tuple of (unique_input_dim_index, padded_out_width, apply_relu)."""
    num_unique = len(unique_dims)
    num_layers = len(layer_specs)

    def kernel(*refs):
        x_ref, mpa_ref = refs[0], refs[1]
        r_refs = refs[2:2 + num_unique]                              # R_0 .. R_{U-1}
        wz_refs = refs[2 + num_unique:2 + num_unique + num_layers]   # Wz_0 .. Wz_{L-1}
        wb_ref = refs[2 + num_unique + num_layers]                   # fused Wb
        out_ref = refs[-1]

        x = x_ref[...].astype(compute_dtype)      # [bt, d0]
        mpa_f = mpa_ref[...]                      # [bt, Kaug] f32 (ones column appended)
        mpa_c = mpa_f.astype(compute_dtype)

        # Every layer's per-sample bias in ONE MXU matmul; static lane slices below.
        bias_all = jnp.dot(mpa_c, wb_ref[...], preferred_element_type=jnp.float32)

        # meta_param tiled to each unique layer input width: pure lane copies
        # (vld/vst/VPU slots, which have slack) instead of an MXU matmul.
        mpa_tiles = [jnp.concatenate([mpa_f] * d, axis=1) for d in unique_dims]

        y = x.astype(jnp.float32)
        for l, (u, w, relu) in enumerate(layer_specs):
            # x replicated Kaug times along lanes via a 0/1 matrix (MXU):
            # x_rep[b, i*Kaug + k] = x[b, i]
            x_rep = jnp.dot(x, r_refs[u][...], preferred_element_type=jnp.float32)
            # Flattened per-sample outer product z[b, i*Kaug+k] = x[b,i] * mpa[b,k]
            z = (x_rep * mpa_tiles[u]).astype(compute_dtype)
            # One dense MXU matmul per layer + the precomputed per-sample bias.
            y = jnp.dot(z, wz_refs[l][...], preferred_element_type=jnp.float32)
            y = y + bias_all[:, bias_offsets[l]:bias_offsets[l] + w]
            if relu:
                y = jnp.maximum(y, 0.0)
            x = y.astype(compute_dtype)

        out_ref[...] = y.astype(out_ref.dtype)

    return kernel


def meta_unit_forward(x, meta_param, fc_weight, fc_bias, meta_dims,
                      output_layer=True, block_b=None,
                      compute_dtype=jnp.bfloat16):
    """x: [B, x_input_dim], meta_param: [B, meta_input_dim],
    fc_weight: [meta_input_dim, all_dims], fc_bias: [1, all_dims] (or [all_dims])."""
    B, x_input_dim = x.shape
    K, all_dims = fc_weight.shape
    Kaug = K + 1

    layer_plan = [(md, True) for md in meta_dims]
    if output_layer:
        layer_plan.append((1, False))
    out_dim = layer_plan[-1][0]
    out_pad = _round_up(out_dim, 128)          # lane-dense output stores

    # ---- static layout plumbing (wrapper side, free) ----
    wfc_aug = jnp.concatenate(
        [fc_weight.astype(jnp.float32),
         fc_bias.reshape(1, all_dims).astype(jnp.float32)], axis=0)   # [Kaug, all_dims]

    unique_d, r_arrays = [], []
    wz_arrays, wb_arrays = [], []
    layer_specs, bias_offsets = [], []
    count, d, boff = 0, x_input_dim, 0
    for li, (md, relu) in enumerate(layer_plan):
        last = li == len(layer_plan) - 1
        wn = d * md
        if d not in unique_d:
            unique_d.append(d)
            # R_d[i, i*Kaug + k] = 1 : repeats each x element Kaug times.
            r_arrays.append(jnp.repeat(jnp.eye(d, dtype=jnp.float32), Kaug, axis=1))
        u = unique_d.index(d)
        # Wz[i*Kaug + k, j] = Wfc_aug[k, count + i*md + j]
        wz = (wfc_aug[:, count:count + wn]
              .reshape(Kaug, d, md).transpose(1, 0, 2).reshape(d * Kaug, md))
        # Wb[k, j] = Wfc_aug[k, count + d*md + j]   (per-sample bias generator)
        wb = wfc_aug[:, count + wn:count + wn + md]
        width = out_pad if last else md
        if width != md:   # zero-pad final layer to a lane-dense width
            wz = jnp.pad(wz, ((0, 0), (0, width - md)))
            wb = jnp.pad(wb, ((0, 0), (0, width - md)))
        wz_arrays.append(wz)
        wb_arrays.append(wb)
        layer_specs.append((u, width, relu))
        bias_offsets.append(boff)
        boff += width
        count += wn + md
        d = md
    wb_cat = jnp.concatenate(wb_arrays, axis=1)       # [Kaug, sum(widths)]

    # bf16 (or f32) MXU operands; accumulation stays f32 inside the kernel.
    cdt = jnp.dtype(compute_dtype)
    const_arrays = [a.astype(cdt) for a in (r_arrays + wz_arrays + [wb_cat])]

    # Fold the fc bias into the matmuls: append a ones column to meta_param.
    mpa = jnp.concatenate(
        [meta_param.astype(jnp.float32), jnp.ones((B, 1), jnp.float32)], axis=1)
    xf = x.astype(jnp.float32)

    # ---- batch tiling: big MXU M tiles, but >=2 grid steps when possible (v7x) ----
    Bp8 = _round_up(B, 8)
    if block_b is None:
        block_b = 512
    block_b = max(8, _round_up(min(block_b, Bp8), 8))
    if B > 8 and block_b >= Bp8:
        block_b = max(8, _round_up(Bp8 // 2, 8))      # force >=2 grid steps
    Bp = _round_up(B, block_b)
    if Bp != B:
        xf = jnp.pad(xf, ((0, Bp - B), (0, 0)))
        mpa = jnp.pad(mpa, ((0, Bp - B), (0, 0)))

    in_specs = [
        pl.BlockSpec((block_b, x_input_dim), lambda b: (b, 0)),
        pl.BlockSpec((block_b, Kaug), lambda b: (b, 0)),
    ] + [
        # Constant block index -> weights / replication matrices stay VMEM-resident.
        pl.BlockSpec(a.shape, lambda b: (0, 0)) for a in const_arrays
    ]

    kernel = make_meta_unit_kernel(tuple(layer_specs), tuple(unique_d),
                                   tuple(bias_offsets), cdt)
    out = pl.pallas_call(
        kernel,
        out_shape=jax.ShapeDtypeStruct((Bp, out_pad), jnp.float32),
        grid=(Bp // block_b,),
        in_specs=in_specs,
        out_specs=pl.BlockSpec((block_b, out_pad), lambda b: (b, 0)),
        compiler_params=pltpu.CompilerParams(
            dimension_semantics=("parallel",),        # v7x: split batch across TCs
            vmem_limit_bytes=48 * 1024 * 1024),
    )(xf, mpa, *const_arrays)
    return out[:B, :out_dim]


def meta_unit_ref(x, meta_param, fc_weight, fc_bias, meta_dims, output_layer=True):
    """Pure-JAX reference mirroring the PyTorch forward exactly."""
    meta = meta_param @ fc_weight + fc_bias.reshape(1, -1)
    count = 0
    in_dim = x.shape[1]
    for md in meta_dims:
        wn = md * in_dim
        w = meta[:, count:count + wn].reshape(-1, in_dim, md)
        b = meta[:, count + wn:count + wn + md]
        x = jnp.einsum("bi,bio->bo", x, w) + b
        x = jax.nn.relu(x)
        count += wn + md
        in_dim = md
    if output_layer:
        wn = in_dim
        w = meta[:, count:count + wn].reshape(-1, in_dim, 1)
        b = meta[:, count + wn:count + wn + 1]
        x = jnp.einsum("bi,bio->bo", x, w) + b
    return x


if __name__ == "__main__":
    # Small shapes consistent with the module's forward.
    B = 24
    x_input_dim = 16
    meta_input_dim = 32
    meta_dims = (32, 16)
    output_layer = True

    # all_dims exactly as in MetaUnit.__init__
    all_dims = 0
    d = x_input_dim
    for md in meta_dims:
        all_dims += md * (d + 1)
        d = md
    if output_layer:
        all_dims += d + 1  # = 1089 for this config

    key = jax.random.PRNGKey(0)
    kx, km, kw, kb = jax.random.split(key, 4)
    x = jax.random.normal(kx, (B, x_input_dim), dtype=jnp.float32)
    meta_param = jax.random.normal(km, (B, meta_input_dim), dtype=jnp.float32)
    fc_weight = jax.random.normal(kw, (meta_input_dim, all_dims), dtype=jnp.float32) * 0.1
    fc_bias = jax.random.normal(kb, (1, all_dims), dtype=jnp.float32) * 0.1

    ref = meta_unit_ref(x, meta_param, fc_weight, fc_bias, meta_dims, output_layer)

    # Strict-accuracy f32 path (exercises the batch-tiled grid: block 16, 2 steps).
    out_f32 = meta_unit_forward(x, meta_param, fc_weight, fc_bias, meta_dims,
                                output_layer, compute_dtype=jnp.float32)
    out_f32 = jax.block_until_ready(out_f32)
    assert out_f32.shape == (B, 1), out_f32.shape
    assert jnp.allclose(out_f32, ref, atol=2e-3, rtol=2e-3), (out_f32, ref)

    # Default fast path: bf16 MXU operands, f32 accumulation (looser tolerance).
    out_bf16 = meta_unit_forward(x, meta_param, fc_weight, fc_bias, meta_dims,
                                 output_layer, compute_dtype=jnp.bfloat16)
    out_bf16 = jax.block_until_ready(out_bf16)
    assert out_bf16.shape == (B, 1), out_bf16.shape
    assert jnp.allclose(out_bf16, ref, atol=1e-1, rtol=1e-1), (out_bf16, ref)

    print("KERNEL_OK")
</pallas_src>

<mosaic_0001>
module attributes {stable_mosaic.version = 11 : i64} {
  func.func @kernel(%arg0: i32, %arg1: memref<16x16xf32, #tpu.memory_space<vmem>>, %arg2: memref<16x33xf32, #tpu.memory_space<vmem>>, %arg3: memref<16x528xf32, #tpu.memory_space<vmem>>, %arg4: memref<32x1056xf32, #tpu.memory_space<vmem>>, %arg5: memref<528x32xf32, #tpu.memory_space<vmem>>, %arg6: memref<1056x16xf32, #tpu.memory_space<vmem>>, %arg7: memref<528x128xf32, #tpu.memory_space<vmem>>, %arg8: memref<33x176xf32, #tpu.memory_space<vmem>>, %arg9: memref<16x128xf32, #tpu.memory_space<vmem>>) attributes {dimension_semantics = [#tpu.dimension_semantics<parallel>], iteration_bounds = array<i64: 2>, scalar_prefetch = 0 : i64, scratch_operands = 0 : i64, tpu.core_type = #tpu.core_type<tc>, window_params = [{transform_indices = @transform_0, window_bounds = array<i64: 16, 16>}, {transform_indices = @transform_1, window_bounds = array<i64: 16, 33>}, {pipeline_mode = #tpu.pipeline_mode<synchronous>, transform_indices = @transform_2, window_bounds = array<i64: 16, 528>}, {pipeline_mode = #tpu.pipeline_mode<synchronous>, transform_indices = @transform_3, window_bounds = array<i64: 32, 1056>}, {pipeline_mode = #tpu.pipeline_mode<synchronous>, transform_indices = @transform_4, window_bounds = array<i64: 528, 32>}, {pipeline_mode = #tpu.pipeline_mode<synchronous>, transform_indices = @transform_5, window_bounds = array<i64: 1056, 16>}, {pipeline_mode = #tpu.pipeline_mode<synchronous>, transform_indices = @transform_6, window_bounds = array<i64: 528, 128>}, {pipeline_mode = #tpu.pipeline_mode<synchronous>, transform_indices = @transform_7, window_bounds = array<i64: 33, 176>}, {transform_indices = @transform_8, window_bounds = array<i64: 16, 128>}]} {
    %c0 = arith.constant 0 : index
    %c0_0 = arith.constant 0 : index
    %0 = vector.load %arg1[%c0, %c0_0] : memref<16x16xf32, #tpu.memory_space<vmem>>, vector<16x16xf32>
    %c0_1 = arith.constant 0 : index
    %c0_2 = arith.constant 0 : index
    %1 = vector.load %arg2[%c0_1, %c0_2] : memref<16x33xf32, #tpu.memory_space<vmem>>, vector<16x33xf32>
    %c0_3 = arith.constant 0 : index
    %c0_4 = arith.constant 0 : index
    %2 = vector.load %arg8[%c0_3, %c0_4] : memref<33x176xf32, #tpu.memory_space<vmem>>, vector<33x176xf32>
    %cst = arith.constant dense<0.000000e+00> : vector<16x176xf32>
    %3 = tpu.matmul %1, %2, %cst {dimension_numbers = #tpu.dot_dimension_numbers<[1], [0], [0], [1], [0, 0, 1, 1], [], []>} : vector<16x33xf32>, vector<33x176xf32>, vector<16x176xf32> -> vector<16x176xf32>
    %4 = tpu.concatenate %1, %1, %1, %1, %1, %1, %1, %1, %1, %1, %1, %1, %1, %1, %1, %1 in 1 : vector<16x33xf32>, vector<16x33xf32>, vector<16x33xf32>, vector<16x33xf32>, vector<16x33xf32>, vector<16x33xf32>, vector<16x33xf32>, vector<16x33xf32>, vector<16x33xf32>, vector<16x33xf32>, vector<16x33xf32>, vector<16x33xf32>, vector<16x33xf32>, vector<16x33xf32>, vector<16x33xf32>, vector<16x33xf32> -> vector<16x528xf32>
    %5 = tpu.concatenate %1, %1, %1, %1, %1, %1, %1, %1, %1, %1, %1, %1, %1, %1, %1, %1 in 1 : vector<16x33xf32>, vector<16x33xf32>, vector<16x33xf32>, vector<16x33xf32>, vector<16x33xf32>, vector<16x33xf32>, vector<16x33xf32>, vector<16x33xf32>, vector<16x33xf32>, vector<16x33xf32>, vector<16x33xf32>, vector<16x33xf32>, vector<16x33xf32>, vector<16x33xf32>, vector<16x33xf32>, vector<16x33xf32> -> vector<16x528xf32>
    %6 = tpu.concatenate %1, %1, %1, %1, %1, %1, %1, %1, %1, %1, %1, %1, %1, %1, %1, %1 in 1 : vector<16x33xf32>, vector<16x33xf32>, vector<16x33xf32>, vector<16x33xf32>, vector<16x33xf32>, vector<16x33xf32>, vector<16x33xf32>, vector<16x33xf32>, vector<16x33xf32>, vector<16x33xf32>, vector<16x33xf32>, vector<16x33xf32>, vector<16x33xf32>, vector<16x33xf32>, vector<16x33xf32>, vector<16x33xf32> -> vector<16x528xf32>
    %7 = tpu.concatenate %5, %6 in 1 : vector<16x528xf32>, vector<16x528xf32> -> vector<16x1056xf32>
    %c0_5 = arith.constant 0 : index
    %c0_6 = arith.constant 0 : index
    %8 = vector.load %arg3[%c0_5, %c0_6] : memref<16x528xf32, #tpu.memory_space<vmem>>, vector<16x528xf32>
    %cst_7 = arith.constant dense<0.000000e+00> : vector<16x528xf32>
    %9 = tpu.matmul %0, %8, %cst_7 {dimension_numbers = #tpu.dot_dimension_numbers<[1], [0], [0], [1], [0, 0, 1, 1], [], []>} : vector<16x16xf32>, vector<16x528xf32>, vector<16x528xf32> -> vector<16x528xf32>
    %10 = arith.mulf %9, %4 : vector<16x528xf32>
    %c0_8 = arith.constant 0 : index
    %c0_9 = arith.constant 0 : index
    %11 = vector.load %arg5[%c0_8, %c0_9] : memref<528x32xf32, #tpu.memory_space<vmem>>, vector<528x32xf32>
    %cst_10 = arith.constant dense<0.000000e+00> : vector<16x32xf32>
    %12 = tpu.matmul %10, %11, %cst_10 {dimension_numbers = #tpu.dot_dimension_numbers<[1], [0], [0], [1], [0, 0, 1, 1], [], []>} : vector<16x528xf32>, vector<528x32xf32>, vector<16x32xf32> -> vector<16x32xf32>
    %13 = vector.extract_strided_slice %3 {offsets = [0, 0], sizes = [16, 32], strides = [1, 1]} : vector<16x176xf32> to vector<16x32xf32>
    %14 = arith.addf %12, %13 : vector<16x32xf32>
    %cst_11 = arith.constant 0.000000e+00 : f32
    %15 = vector.broadcast %cst_11 : f32 to vector<16x32xf32>
    %16 = arith.maximumf %14, %15 : vector<16x32xf32>
    %c0_12 = arith.constant 0 : index
    %c0_13 = arith.constant 0 : index
    %17 = vector.load %arg4[%c0_12, %c0_13] : memref<32x1056xf32, #tpu.memory_space<vmem>>, vector<32x1056xf32>
    %cst_14 = arith.constant dense<0.000000e+00> : vector<16x1056xf32>
    %18 = tpu.matmul %16, %17, %cst_14 {dimension_numbers = #tpu.dot_dimension_numbers<[1], [0], [0], [1], [0, 0, 1, 1], [], []>} : vector<16x32xf32>, vector<32x1056xf32>, vector<16x1056xf32> -> vector<16x1056xf32>
    %19 = arith.mulf %18, %7 : vector<16x1056xf32>
    %c0_15 = arith.constant 0 : index
    %c0_16 = arith.constant 0 : index
    %20 = vector.load %arg6[%c0_15, %c0_16] : memref<1056x16xf32, #tpu.memory_space<vmem>>, vector<1056x16xf32>
    %cst_17 = arith.constant dense<0.000000e+00> : vector<16x16xf32>
    %21 = tpu.matmul %19, %20, %cst_17 {dimension_numbers = #tpu.dot_dimension_numbers<[1], [0], [0], [1], [0, 0, 1, 1], [], []>} : vector<16x1056xf32>, vector<1056x16xf32>, vector<16x16xf32> -> vector<16x16xf32>
    %22 = vector.extract_strided_slice %3 {offsets = [0, 32], sizes = [16, 16], strides = [1, 1]} : vector<16x176xf32> to vector<16x16xf32>
    %23 = arith.addf %21, %22 : vector<16x16xf32>
    %cst_18 = arith.constant 0.000000e+00 : f32
    %24 = vector.broadcast %cst_18 : f32 to vector<16x16xf32>
    %25 = arith.maximumf %23, %24 : vector<16x16xf32>
    %c0_19 = arith.constant 0 : index
    %c0_20 = arith.constant 0 : index
    %26 = vector.load %arg3[%c0_19, %c0_20] : memref<16x528xf32, #tpu.memory_space<vmem>>, vector<16x528xf32>
    %cst_21 = arith.constant dense<0.000000e+00> : vector<16x528xf32>
    %27 = tpu.matmul %25, %26, %cst_21 {dimension_numbers = #tpu.dot_dimension_numbers<[1], [0], [0], [1], [0, 0, 1, 1], [], []>} : vector<16x16xf32>, vector<16x528xf32>, vector<16x528xf32> -> vector<16x528xf32>
    %28 = arith.mulf %27, %4 : vector<16x528xf32>
    %c0_22 = arith.constant 0 : index
    %c0_23 = arith.constant 0 : index
    %29 = vector.load %arg7[%c0_22, %c0_23] : memref<528x128xf32, #tpu.memory_space<vmem>>, vector<528x128xf32>
    %cst_24 = arith.constant dense<0.000000e+00> : vector<16x128xf32>
    %30 = tpu.matmul %28, %29, %cst_24 {dimension_numbers = #tpu.dot_dimension_numbers<[1], [0], [0], [1], [0, 0, 1, 1], [], []>} : vector<16x528xf32>, vector<528x128xf32>, vector<16x128xf32> -> vector<16x128xf32>
    %31 = vector.extract_strided_slice %3 {offsets = [0, 48], sizes = [16, 128], strides = [1, 1]} : vector<16x176xf32> to vector<16x128xf32>
    %32 = arith.addf %30, %31 : vector<16x128xf32>
    %c0_25 = arith.constant 0 : index
    %c0_26 = arith.constant 0 : index
    %33 = vector.load %arg9[%c0_25, %c0_26] : memref<16x128xf32, #tpu.memory_space<vmem>>, vector<16x128xf32>
    tpu.vector_store %arg9[%c0_25, %c0_26], %32 {strides = array<i32>} : memref<16x128xf32, #tpu.memory_space<vmem>>, vector<16x128xf32>,
    return
  }
  func.func @transform_0(%arg0: i32) -> (i32, i32) {
    %c0_i32 = arith.constant 0 : i32
    %c0_i32_0 = arith.constant 0 : i32
    return %arg0, %c0_i32 : i32, i32
  }
  func.func @transform_1(%arg0: i32) -> (i32, i32) {
    %c0_i32 = arith.constant 0 : i32
    %c0_i32_0 = arith.constant 0 : i32
    return %arg0, %c0_i32 : i32, i32
  }
  func.func @transform_2(%arg0: i32) -> (i32, i32) {
    %c0_i32 = arith.constant 0 : i32
    %c0_i32_0 = arith.constant 0 : i32
    %c0_i32_1 = arith.constant 0 : i32
    return %c0_i32, %c0_i32_0 : i32, i32
  }
  func.func @transform_3(%arg0: i32) -> (i32, i32) {
    %c0_i32 = arith.constant 0 : i32
    %c0_i32_0 = arith.constant 0 : i32
    %c0_i32_1 = arith.constant 0 : i32
    return %c0_i32, %c0_i32_0 : i32, i32
  }
  func.func @transform_4(%arg0: i32) -> (i32, i32) {
    %c0_i32 = arith.constant 0 : i32
    %c0_i32_0 = arith.constant 0 : i32
    %c0_i32_1 = arith.constant 0 : i32
    return %c0_i32, %c0_i32_0 : i32, i32
  }
  func.func @transform_5(%arg0: i32) -> (i32, i32) {
    %c0_i32 = arith.constant 0 : i32
    %c0_i32_0 = arith.constant 0 : i32
    %c0_i32_1 = arith.constant 0 : i32
    return %c0_i32, %c0_i32_0 : i32, i32
  }
  func.func @transform_6(%arg0: i32) -> (i32, i32) {
    %c0_i32 = arith.constant 0 : i32
    %c0_i32_0 = arith.constant 0 : i32
    %c0_i32_1 = arith.constant 0 : i32
    return %c0_i32, %c0_i32_0 : i32, i32
  }
  func.func @transform_7(%arg0: i32) -> (i32, i32) {
    %c0_i32 = arith.constant 0 : i32
    %c0_i32_0 = arith.constant 0 : i32
    %c0_i32_1 = arith.constant 0 : i32
    return %c0_i32, %c0_i32_0 : i32, i32
  }
  func.func @transform_8(%arg0: i32) -> (i32, i32) {
    %c0_i32 = arith.constant 0 : i32
    %c0_i32_0 = arith.constant 0 : i32
    return %arg0, %c0_i32 : i32, i32
  }
}

</mosaic_0001>

<llo_original>
// kernel: tpu_custom_call.1
$region0: #{tpu_custom_call.1}
  #allocation0 [shape = 'u32[]', space=smem, size = 0x4, offset = 0x4, fixed_abs, tag = 'smem constant byte address 0x4 - core index']
  #allocation1 [shape = 'u32[144,128]{1,0:T(1,128)}', space=vmem, size = 0x12000, scoped, tag = 'internal scratch']
  %s0 = inlined_call_operand.vmem [shape: f32[32,16], index: 0, kind: input, shape index: {}]
  %s1 = inlined_call_operand.vmem [shape: f32[32,33], index: 1, kind: input, shape index: {}]
  %s2 = inlined_call_operand.vmem [shape: f32[16,528], index: 2, kind: input, shape index: {}]
  %s3 = inlined_call_operand.vmem [shape: f32[32,1056], index: 3, kind: input, shape index: {}]
  %s4 = inlined_call_operand.vmem [shape: f32[528,32], index: 4, kind: input, shape index: {}]
  %s5 = inlined_call_operand.vmem [shape: f32[1056,16], index: 5, kind: input, shape index: {}]
  %s6 = inlined_call_operand.vmem [shape: f32[528,128], index: 6, kind: input, shape index: {}]
  %s7 = inlined_call_operand.vmem [shape: f32[33,176], index: 7, kind: input, shape index: {}]
  %s8 = inlined_call_operand.hbm [shape: f32[32,128], index: 8, kind: output, shape index: {}]
  %s9 = sld [smem:[#allocation0]]
  $region65: #{tpu_custom_call.1} parent=0
    _
  %s11 = ssub.s32 1, %s9
  %s12 = scalar_select 0, %s11, %s9
  $region1: #{tpu_custom_call.1} parent=0
    #allocation2 [shape = 'u8[16384]{0}', space=vmem, size = 0x4000, scoped, tag = 'output window, operand 0']
    #allocation3 [shape = 's32[2]{0}', space=sflag, size = 0x8, scoped, tag = 'scoped memory for tpu_custom_call.1']
    %13 = vsyncpa [#allocation3], 0
    %s14 = scalar_lea.sflag [#allocation3], 1
    %15 = vsyncpa %s14, 0
    loop: start=0, step=1, limit=4
    $region2: #{tpu_custom_call.1} parent=1 // loop_pre_header
      _
    $region3: #{tpu_custom_call.1} parent=1 // loop_header
      %s17 = sphi 0, %s21
      %p18 = scmp.ge.s32.totalorder %s17, 4
      %s27 = sphi 0, %s29
      %s30 = sphi 0, %s27
      %s31 = sphi 0, %s30
      %s47 = sphi 0, %s31
      %s53 = sphi 0, %s55
      %s56 = sphi 0, %s53
      %s57 = sphi 0, %s56
      %s73 = sphi 0, %s57
      %s77 = sphi 0, %s77
      %s79 = sphi 0, %s77
      %s80 = sphi 0, %s79
      %s94 = sphi 0, %s80
      %s98 = sphi 0, %s98
      %s100 = sphi 0, %s98
      %s101 = sphi 0, %s100
      %s115 = sphi 0, %s101
      %s119 = sphi 0, %s119
      %s121 = sphi 0, %s119
      %s122 = sphi 0, %s121
      %s136 = sphi 0, %s122
      %s140 = sphi 0, %s140
      %s142 = sphi 0, %s140
      %s143 = sphi 0, %s142
      %s157 = sphi 0, %s143
      %s161 = sphi 0, %s161
      %s163 = sphi 0, %s161
      %s164 = sphi 0, %s163
      %s178 = sphi 0, %s164
      %s182 = sphi 0, %s182
      %s184 = sphi 0, %s182
      %s185 = sphi 0, %s184
      %s199 = sphi 0, %s185
      %s205 = sphi 0, %s207
      %s208 = sphi 0, %s205
      %s209 = sphi 0, %s208
      %s225 = sphi 0, %s209
    $region4: #{tpu_custom_call.1} parent=1 // loop_header_branch
      %20 = sbr.rel (%p18) target = $region8
    $region5: #{tpu_custom_call.1} parent=1 // loop_body
      %s22 = ssub.s32 %s17, 1
      %s23 = ssub.s32 %s17, 2
      %s24 = sadd.s32 %s17, 1
      %s25 = ssub.s32 %s17, %s24
      %p26 = scmp.eq.s32.totalorder %s25, 0
      %s28 = sadd.s32 %s27, 1
      %s29 = scalar_select %p26, %s27, %s28
      %p32 = pneg %p26
      %p33 = scmp.eq.s32.totalorder %s17, 1
      %p34 = por %p32, %p33
      %p35 = scmp.ne.s32.totalorder %s27, %s30
      %p36 = scmp.eq.s32.totalorder %s17, 0
      %p37 = por %p35, %p36
      %p38 = scmp.ne.s32.totalorder %s27, %s30
      %p39 = scmp.eq.s32.totalorder %s22, 1
      %p40 = por %p38, %p39
      %p41 = scmp.ne.s32.totalorder %s30, %s31
      %p42 = scmp.eq.s32.totalorder %s22, 0
      %p43 = por %p41, %p42
      %p44 = scmp.ne.s32.totalorder %s30, %s31
      %p45 = scmp.eq.s32.totalorder %s23, 1
      %p46 = por %p44, %p45
      %p48 = scmp.ne.s32.totalorder %s31, %s47
      %p49 = scmp.eq.s32.totalorder %s23, 0
      %p50 = por %p48, %p49
      %s51 = ssub.s32 %s17, %s24
      %p52 = scmp.eq.s32.totalorder %s51, 0
      %s54 = sadd.s32 %s53, 1
      %s55 = scalar_select %p52, %s53, %s54
      %p58 = pneg %p52
      %p59 = scmp.eq.s32.totalorder %s17, 1
      %p60 = por %p58, %p59
      %p61 = scmp.ne.s32.totalorder %s53, %s56
      %p62 = scmp.eq.s32.totalorder %s17, 0
      %p63 = por %p61, %p62
      %p64 = scmp.ne.s32.totalorder %s53, %s56
      %p65 = scmp.eq.s32.totalorder %s22, 1
      %p66 = por %p64, %p65
      %p67 = scmp.ne.s32.totalorder %s56, %s57
      %p68 = scmp.eq.s32.totalorder %s22, 0
      %p69 = por %p67, %p68
      %p70 = scmp.ne.s32.totalorder %s56, %s57
      %p71 = scmp.eq.s32.totalorder %s23, 1
      %p72 = por %p70, %p71
      %p74 = scmp.ne.s32.totalorder %s57, %s73
      %p75 = scmp.eq.s32.totalorder %s23, 0
      %p76 = por %p74, %p75
      %s78 = sadd.s32 %s77, 1
      %p81 = scmp.eq.s32.totalorder %s17, 1
      %p82 = scmp.ne.s32.totalorder %s77, %s79
      %p83 = scmp.eq.s32.totalorder %s17, 0
      %p84 = por %p82, %p83
      %p85 = scmp.ne.s32.totalorder %s77, %s79
      %p86 = scmp.eq.s32.totalorder %s22, 1
      %p87 = por %p85, %p86
      %p88 = scmp.ne.s32.totalorder %s79, %s80
      %p89 = scmp.eq.s32.totalorder %s22, 0
      %p90 = por %p88, %p89
      %p91 = scmp.ne.s32.totalorder %s79, %s80
      %p92 = scmp.eq.s32.totalorder %s23, 1
      %p93 = por %p91, %p92
      %p95 = scmp.ne.s32.totalorder %s80, %s94
      %p96 = scmp.eq.s32.totalorder %s23, 0
      %p97 = por %p95, %p96
      %s99 = sadd.s32 %s98, 1
      %p102 = scmp.eq.s32.totalorder %s17, 1
      %p103 = scmp.ne.s32.totalorder %s98, %s100
      %p104 = scmp.eq.s32.totalorder %s17, 0
      %p105 = por %p103, %p104
      %p106 = scmp.ne.s32.totalorder %s98, %s100
      %p107 = scmp.eq.s32.totalorder %s22, 1
      %p108 = por %p106, %p107
      %p109 = scmp.ne.s32.totalorder %s100, %s101
      %p110 = scmp.eq.s32.totalorder %s22, 0
      %p111 = por %p109, %p110
      %p112 = scmp.ne.s32.totalorder %s100, %s101
      %p113 = scmp.eq.s32.totalorder %s23, 1
      %p114 = por %p112, %p113
      %p116 = scmp.ne.s32.totalorder %s101, %s115
      %p117 = scmp.eq.s32.totalorder %s23, 0
      %p118 = por %p116, %p117
      %s120 = sadd.s32 %s119, 1
      %p123 = scmp.eq.s32.totalorder %s17, 1
      %p124 = scmp.ne.s32.totalorder %s119, %s121
      %p125 = scmp.eq.s32.totalorder %s17, 0
      %p126 = por %p124, %p125
      %p127 = scmp.ne.s32.totalorder %s119, %s121
      %p128 = scmp.eq.s32.totalorder %s22, 1
      %p129 = por %p127, %p128
      %p130 = scmp.ne.s32.totalorder %s121, %s122
      %p131 = scmp.eq.s32.totalorder %s22, 0
      %p132 = por %p130, %p131
      %p133 = scmp.ne.s32.totalorder %s121, %s122
      %p134 = scmp.eq.s32.totalorder %s23, 1
      %p135 = por %p133, %p134
      %p137 = scmp.ne.s32.totalorder %s122, %s136
      %p138 = scmp.eq.s32.totalorder %s23, 0
      %p139 = por %p137, %p138
      %s141 = sadd.s32 %s140, 1
      %p144 = scmp.eq.s32.totalorder %s17, 1
      %p145 = scmp.ne.s32.totalorder %s140, %s142
      %p146 = scmp.eq.s32.totalorder %s17, 0
      %p147 = por %p145, %p146
      %p148 = scmp.ne.s32.totalorder %s140, %s142
      %p149 = scmp.eq.s32.totalorder %s22, 1
      %p150 = por %p148, %p149
      %p151 = scmp.ne.s32.totalorder %s142, %s143
      %p152 = scmp.eq.s32.totalorder %s22, 0
      %p153 = por %p151, %p152
      %p154 = scmp.ne.s32.totalorder %s142, %s143
      %p155 = scmp.eq.s32.totalorder %s23, 1
      %p156 = por %p154, %p155
      %p158 = scmp.ne.s32.totalorder %s143, %s157
      %p159 = scmp.eq.s32.totalorder %s23, 0
      %p160 = por %p158, %p159
      %s162 = sadd.s32 %s161, 1
      %p165 = scmp.eq.s32.totalorder %s17, 1
      %p166 = scmp.ne.s32.totalorder %s161, %s163
      %p167 = scmp.eq.s32.totalorder %s17, 0
      %p168 = por %p166, %p167
      %p169 = scmp.ne.s32.totalorder %s161, %s163
      %p170 = scmp.eq.s32.totalorder %s22, 1
      %p171 = por %p169, %p170
      %p172 = scmp.ne.s32.totalorder %s163, %s164
      %p173 = scmp.eq.s32.totalorder %s22, 0
      %p174 = por %p172, %p173
      %p175 = scmp.ne.s32.totalorder %s163, %s164
      %p176 = scmp.eq.s32.totalorder %s23, 1
      %p177 = por %p175, %p176
      %p179 = scmp.ne.s32.totalorder %s164, %s178
      %p180 = scmp.eq.s32.totalorder %s23, 0
      %p181 = por %p179, %p180
      %s183 = sadd.s32 %s182, 1
      %p186 = scmp.eq.s32.totalorder %s17, 1
      %p187 = scmp.ne.s32.totalorder %s182, %s184
      %p188 = scmp.eq.s32.totalorder %s17, 0
      %p189 = por %p187, %p188
      %p190 = scmp.ne.s32.totalorder %s182, %s184
      %p191 = scmp.eq.s32.totalorder %s22, 1
      %p192 = por %p190, %p191
      %p193 = scmp.ne.s32.totalorder %s184, %s185
      %p194 = scmp.eq.s32.totalorder %s22, 0
      %p195 = por %p193, %p194
      %p196 = scmp.ne.s32.totalorder %s184, %s185
      %p197 = scmp.eq.s32.totalorder %s23, 1
      %p198 = por %p196, %p197
      %p200 = scmp.ne.s32.totalorder %s185, %s199
      %p201 = scmp.eq.s32.totalorder %s23, 0
      %p202 = por %p200, %p201
      %s203 = ssub.s32 %s17, %s24
      %p204 = scmp.eq.s32.totalorder %s203, 0
      %s206 = sadd.s32 %s205, 1
      %s207 = scalar_select %p204, %s205, %s206
      %p210 = pneg %p204
      %p211 = scmp.eq.s32.totalorder %s17, 1
      %p212 = por %p210, %p211
      %p213 = scmp.ne.s32.totalorder %s205, %s208
      %p214 = scmp.eq.s32.totalorder %s17, 0
      %p215 = por %p213, %p214
      %p216 = scmp.ne.s32.totalorder %s205, %s208
      %p217 = scmp.eq.s32.totalorder %s22, 1
      %p218 = por %p216, %p217
      %p219 = scmp.ne.s32.totalorder %s208, %s209
      %p220 = scmp.eq.s32.totalorder %s22, 0
      %p221 = por %p219, %p220
      %p222 = scmp.ne.s32.totalorder %s208, %s209
      %p223 = scmp.eq.s32.totalorder %s23, 1
      %p224 = por %p222, %p223
      %p226 = scmp.ne.s32.totalorder %s209, %s225
      %p227 = scmp.eq.s32.totalorder %s23, 0
      %p228 = por %p226, %p227
      %p229 = scmp.le.s32.totalorder 1, %s17
      %p230 = scmp.lt.s32.totalorder %s17, 3
      %p231 = pnand %p229, %p230
      %p232 = pneg %p231
      // Predicated region
      $region9: #{tpu_custom_call.1} parent=5 // pred_check
        _
      $region10: #{tpu_custom_call.1} parent=5 // pred_check_branch
        %234 = sbr.rel (%p231) target = $region12
      $region11: #{tpu_custom_call.1} parent=5 // pred_region
        %s235 = ssub.s32 %s17, 1
        // Predicated region
        $region13: #{tpu_custom_call.1} parent=11 // pred_check
          %p236 = pneg %p90
        $region14: #{tpu_custom_call.1} parent=11 // pred_check_branch
          %238 = sbr.rel (%p236) target = $region16
        $region15: #{tpu_custom_call.1} parent=11 // pred_region
          _
        $region16: #{tpu_custom_call.1} parent=11 // pred_fallthru
          _
        // Predicated region
        $region17: #{tpu_custom_call.1} parent=11 // pred_check
          %p239 = pneg %p111
        $region18: #{tpu_custom_call.1} parent=11 // pred_check_branch
          %241 = sbr.rel (%p239) target = $region20
        $region19: #{tpu_custom_call.1} parent=11 // pred_region
          _
        $region20: #{tpu_custom_call.1} parent=11 // pred_fallthru
          _
        // Predicated region
        $region21: #{tpu_custom_call.1} parent=11 // pred_check
          %p242 = pneg %p132
        $region22: #{tpu_custom_call.1} parent=11 // pred_check_branch
          %244 = sbr.rel (%p242) target = $region24
        $region23: #{tpu_custom_call.1} parent=11 // pred_region
          _
        $region24: #{tpu_custom_call.1} parent=11 // pred_fallthru
          _
        // Predicated region
        $region25: #{tpu_custom_call.1} parent=11 // pred_check
          %p245 = pneg %p153
        $region26: #{tpu_custom_call.1} parent=11 // pred_check_branch
          %247 = sbr.rel (%p245) target = $region28
        $region27: #{tpu_custom_call.1} parent=11 // pred_region
          _
        $region28: #{tpu_custom_call.1} parent=11 // pred_fallthru
          _
        // Predicated region
        $region29: #{tpu_custom_call.1} parent=11 // pred_check
          %p248 = pneg %p174
        $region30: #{tpu_custom_call.1} parent=11 // pred_check_branch
          %250 = sbr.rel (%p248) target = $region32
        $region31: #{tpu_custom_call.1} parent=11 // pred_region
          _
        $region32: #{tpu_custom_call.1} parent=11 // pred_fallthru
          _
        // Predicated region
        $region33: #{tpu_custom_call.1} parent=11 // pred_check
          %p251 = pneg %p195
        $region34: #{tpu_custom_call.1} parent=11 // pred_check_branch
          %253 = sbr.rel (%p251) target = $region36
        $region35: #{tpu_custom_call.1} parent=11 // pred_region
          _
        $region36: #{tpu_custom_call.1} parent=11 // pred_fallthru
          _
      $region12: #{tpu_custom_call.1} parent=5 // pred_fallthru
        _
      %p254 = scmp.lt.s32.totalorder %s17, 2
      // Predicated region
      $region37: #{tpu_custom_call.1} parent=5 // pred_check
        %p255 = pneg %p254
      $region38: #{tpu_custom_call.1} parent=5 // pred_check_branch
        %257 = sbr.rel (%p255) target = $region40
      $region39: #{tpu_custom_call.1} parent=5 // pred_region
        // Predicated region
        $region41: #{tpu_custom_call.1} parent=39 // pred_check
          %p258 = pneg %p37
        $region42: #{tpu_custom_call.1} parent=39 // pred_check_branch
          %260 = sbr.rel (%p258) target = $region44
        $region43: #{tpu_custom_call.1} parent=39 // pred_region
          %s261 = smul.u32 2, %s17
          %p262 = scmp.lt.s32.totalorder %s261, 3
          %s263 = scalar_select %p262, %s261, 3
          %s264 = smul.addr %s263, 8
          %s265 = scalar_lea.vmem %s0, %s264
          %s266 = smul.u32 2, %s17
        $region44: #{tpu_custom_call.1} parent=39 // pred_fallthru
          _
        // Predicated region
        $region45: #{tpu_custom_call.1} parent=39 // pred_check
          %p267 = pneg %p63
        $region46: #{tpu_custom_call.1} parent=39 // pred_check_branch
          %269 = sbr.rel (%p267) target = $region48
        $region47: #{tpu_custom_call.1} parent=39 // pred_region
          %s270 = smul.u32 2, %s17
          %p271 = scmp.lt.s32.totalorder %s270, 3
          %s272 = scalar_select %p271, %s270, 3
          %s273 = smul.addr %s272, 8
          %s274 = scalar_lea.vmem %s1, %s273
          %s275 = smul.u32 2, %s17
        $region48: #{tpu_custom_call.1} parent=39 // pred_fallthru
          _
      $region40: #{tpu_custom_call.1} parent=5 // pred_fallthru
        _
      %p276 = scmp.le.s32.totalorder 1, %s17
      %p277 = scmp.lt.s32.totalorder %s17, 3
      %p278 = pnand %p276, %p277
      %p279 = pneg %p278
      // Predicated region
      $region49: #{tpu_custom_call.1} parent=5 // pred_check
        _
      $region50: #{tpu_custom_call.1} parent=5 // pred_check_branch
        %281 = sbr.rel (%p278) target = $region52
      $region51: #{tpu_custom_call.1} parent=5 // pred_region
        %s282 = ssub.s32 %s17, 1
        %s283 = smul.u32 2, %s22
        %p284 = scmp.lt.s32.totalorder %s283, 3
        %s285 = scalar_select %p284, %s283, 3
        %s286 = smul.addr %s285, 8
        %s287 = scalar_lea.vmem %s0, %s286
        %p288 = pneg %p43
        %p289 = pneg %p40
        %s290 = smul.u32 2, %s22
        %p291 = scmp.lt.s32.totalorder %s290, 3
        %s292 = scalar_select %p291, %s290, 3
        %s293 = smul.addr %s292, 8
        %s294 = scalar_lea.vmem %s1, %s293
        %p295 = pneg %p69
        %p296 = pneg %p66
        %p297 = pneg %p90
        %p298 = pneg %p87
        %p299 = pneg %p111
        %p300 = pneg %p108
        %p301 = pneg %p132
        %p302 = pneg %p129
        %p303 = pneg %p153
        %p304 = pneg %p150
        %p305 = pneg %p174
        %p306 = pneg %p171
        %p307 = pneg %p195
        %p308 = pneg %p192
        %p309 = pneg %p221
        %p310 = pneg %p218
        %s311 = sand.u32 %s208, 1
        %s312 = scalar_lea.sflag [#allocation3], %s311
        %s313 = sand.u32 %s208, 1
        %s314 = smul.addr %s313, 16
        %s315 = scalar_lea.vmem [#allocation2], %s314
        %s316 = smul.u32 2, %s22
        %p317 = scmp.lt.s32.totalorder %s316, 3
        %s318 = scalar_select %p317, %s316, 3
        %s319 = smul.addr %s318, 8
        %s320 = scalar_lea.vmem %s0, %s319
        %s321 = smul.u32 2, %s22
        %s322 = smul.u32 2, %s22
        %p323 = scmp.lt.s32.totalorder %s322, 3
        %s324 = scalar_select %p323, %s322, 3
        %s325 = smul.addr %s324, 8
        %s326 = scalar_lea.vmem %s1, %s325
        %s327 = smul.u32 2, %s22
        %s328 = smul.u32 2, %s22
        %v329 = vld [vmem:[%s320] sm:$0xff]
        %v330 = vld [vmem:[%s320 + $0x8] sm:$0xff]
        %v331 = vld [vmem:[%s326] sm:$0xff]
        %v332 = vld [vmem:[%s326 + $0x8] sm:$0xff]
        %v333 = vld [vmem:[%s7] sm:$0xff]
        %v334 = vld [vmem:[%s7 + $0x8] sm:$0xff]
        %v335 = vld [vmem:[%s7 + $0x10] sm:$0xff]
        %v336 = vld [vmem:[%s7 + $0x18] sm:$0xff]
        %v337 = vld [vmem:[%s7 + $0x20] sm:$0xff]
        %v338 = vld [vmem:[%s7 + $0x28] sm:$0xff]
        %v339 = vld [vmem:[%s7 + $0x30] sm:$0xff]
        %v340 = vld [vmem:[%s7 + $0x38] sm:$0xff]
        %v341 = vld [vmem:[%s7 + $0x40] sm:$0x1]
        %v342 = vld [vmem:[%s7 + $0x48] sm:$0x1]
        %vm343 = vcmask 269312
        %v345 = vsel %vm343, %v331, 0
        %v348 = vsel %vm343, %v332, 0
        %vm350 = vcmask 1040384
        %v352 = vsel %vm350, %v341, 0
        %v355 = vsel %vm350, %v342, 0
        %357 = vmatprep.subr.mxu0 %v334
        %358 = vmatpush1.msra.mxu0 %v333
        %359 = vmatprep.subr.mxu0 %v336
        %360 = vmatpush1.msra.mxu0 %v335
        %361 = vmatprep.subr.mxu0 %v338
        %362 = vmatpush1.msra.mxu0 %v337
        %363 = vmatprep.subr.mxu0 %v340
        %364 = vmatpush1.msra.mxu0 %v339
        %365 = vmatprep.subr.mxu0 %v355
        %366 = vmatpush1.msra.mxu0 %v352
        %367 = vmatprep.subr.mxu0 0.0
        %368 = vmatpush1.msra.mxu0 0.0
        %369 = vmatprep.subr.mxu0 0.0
        %370 = vmatpush1.msra.mxu0 0.0
        %371 = vmatprep.subr.mxu0 0.0
        %372 = vmatpush1.msra.mxu0 0.0
        %373 = vmatprep.subr.mxu0 0.0
        %374 = vmatpush1.msra.mxu0 0.0
        %375 = vmatprep.subr.mxu0 0.0
        %376 = vmatpush1.msra.mxu0 0.0
        %377 = vmatprep.subr.mxu0 0.0
        %378 = vmatpush1.msra.mxu0 0.0
        %379 = vmatprep.subr.mxu0 0.0
        %380 = vmatpush1.msra.mxu0 0.0
        %381 = vmatprep.subr.mxu0 0.0
        %382 = vmatpush1.msra.mxu0 0.0
        %383 = vmatprep.subr.mxu0 0.0
        %384 = vmatpush1.msra.mxu0 0.0
        %385 = vmatprep.subr.mxu0 0.0
        %386 = vmatpush1.msra.mxu0 0.0
        %387 = vmatprep.subr.mxu0 0.0
        %388 = vmatpush1.msra.mxu0 0.0
        %389 = vmatprep.subr.mxu0 0.0
        %390 = vmatpush1.msra.mxu0 0.0
        %391 = vmatprep.subr.mxu0 0.0
        %392 = vmatpush1.msra.mxu0 0.0
        %393 = vmatprep.subr.mxu0 0.0
        %394 = vmatpush1.msra.mxu0 0.0
        %395 = vmatprep.subr.mxu0 0.0
        %396 = vmatpush1.msra.mxu0 0.0
        %397 = vmatprep.subr.mxu0 0.0
        %398 = vmatpush1.msra.mxu0 0.0
        %399 = vmatprep.subr.mxu0 0.0
        %400 = vmatpush1.msra.mxu0 0.0
        %401 = vmatprep.subr.mxu0 0.0
        %402 = vmatpush1.msra.mxu0 0.0
        %403 = vmatprep.subr.mxu0 0.0
        %404 = vmatpush1.msra.mxu0 0.0
        %405 = vmatprep.subr.mxu0 0.0
        %406 = vmatpush1.msra.mxu0 0.0
        %407 = vmatprep.subr.mxu0 0.0
        %408 = vmatpush1.msra.mxu0 0.0
        %409 = vmatprep.subr.mxu0 0.0
        %410 = vmatpush1.msra.mxu0 0.0
        %411 = vmatprep.subr.mxu0 0.0
        %412 = vmatpush1.msra.mxu0 0.0
        %413 = vmatprep.subr.mxu0 0.0
        %414 = vmatpush1.msra.mxu0 0.0
        %415 = vmatprep.subr.mxu0 0.0
        %416 = vmatpush1.msra.mxu0 0.0
        %417 = vmatprep.subr.mxu0 0.0
        %418 = vmatpush1.msra.mxu0 0.0
        %419 = vmatprep.subr.mxu0 0.0
        %420 = vmatpush1.msra.mxu0 0.0
        %421 = vmatprep.mubr.f32.mxu0 0.0
        %422 = vmatmul.mubr.f32.gmra.mrb[0].mxu0 %v345
        %v423 = vpop.f32.mrb[0].mxu0
        %v424 = vadd.f32 0.0, %v423
        %v425 = vpop.f32.mrb[0].mxu0
        %v426 = vadd.f32 0.0, %v425
        %427 = vmatprep.mubr.f32.mxu0 0.0
        %428 = vmatmul.mubr.f32.gmra.mrb[0].mxu0 %v348
        %v429 = vpop.f32.mrb[0].mxu0
        %v430 = vadd.f32 0.0, %v429
        %v431 = vpop.f32.mrb[0].mxu0
        %v432 = vadd.f32 0.0, %v431
        %433 = vdwg.mxu0
        %434 = vrot.lane.b32.xlu0 %v331, 33
        %v435 = vpop.permute.xlu0 %434
        %436 = vrot.lane.b32.xlu0 %v332, 33
        %v437 = vpop.permute.xlu0 %436
        %440 = vrot.lane.b32.xlu0 %v331, 66
        %v441 = vpop.permute.xlu0 %440
        %442 = vrot.lane.b32.xlu0 %v332, 66
        %v443 = vpop.permute.xlu0 %442
        %446 = vrot.lane.b32.xlu0 %v331, 99
        %v447 = vpop.permute.xlu0 %446
        %448 = vrot.lane.b32.xlu0 %v332, 99
        %v449 = vpop.permute.xlu0 %448
        %452 = vrot.lane.b32.xlu0 %v331, 4
        %v453 = vpop.permute.xlu0 %452
        %454 = vrot.lane.b32.xlu0 %v332, 4
        %v455 = vpop.permute.xlu0 %454
        %458 = vrot.lane.b32.xlu0 %v331, 37
        %v459 = vpop.permute.xlu0 %458
        %460 = vrot.lane.b32.xlu0 %v332, 37
        %v461 = vpop.permute.xlu0 %460
        %464 = vrot.lane.b32.xlu0 %v331, 70
        %v465 = vpop.permute.xlu0 %464
        %466 = vrot.lane.b32.xlu0 %v332, 70
        %v467 = vpop.permute.xlu0 %466
        %470 = vrot.lane.b32.xlu0 %v331, 103
        %v471 = vpop.permute.xlu0 %470
        %472 = vrot.lane.b32.xlu0 %v332, 103
        %v473 = vpop.permute.xlu0 %472
        %476 = vrot.lane.b32.xlu0 %v331, 8
        %v477 = vpop.permute.xlu0 %476
        %478 = vrot.lane.b32.xlu0 %v332, 8
        %v479 = vpop.permute.xlu0 %478
        %482 = vrot.lane.b32.xlu0 %v331, 41
        %v483 = vpop.permute.xlu0 %482
        %484 = vrot.lane.b32.xlu0 %v332, 41
        %v485 = vpop.permute.xlu0 %484
        %488 = vrot.lane.b32.xlu0 %v331, 74
        %v489 = vpop.permute.xlu0 %488
        %490 = vrot.lane.b32.xlu0 %v332, 74
        %v491 = vpop.permute.xlu0 %490
        %494 = vrot.lane.b32.xlu0 %v331, 107
        %v495 = vpop.permute.xlu0 %494
        %496 = vrot.lane.b32.xlu0 %v332, 107
        %v497 = vpop.permute.xlu0 %496
        %500 = vrot.lane.b32.xlu0 %v331, 12
        %v501 = vpop.permute.xlu0 %500
        %502 = vrot.lane.b32.xlu0 %v332, 12
        %v503 = vpop.permute.xlu0 %502
        %506 = vrot.lane.b32.xlu0 %v331, 45
        %v507 = vpop.permute.xlu0 %506
        %508 = vrot.lane.b32.xlu0 %v332, 45
        %v509 = vpop.permute.xlu0 %508
        %512 = vrot.lane.b32.xlu0 %v331, 78
        %v513 = vpop.permute.xlu0 %512
        %514 = vrot.lane.b32.xlu0 %v332, 78
        %v515 = vpop.permute.xlu0 %514
        %518 = vrot.lane.b32.xlu0 %v331, 111
        %v519 = vpop.permute.xlu0 %518
        %520 = vrot.lane.b32.xlu0 %v332, 111
        %v521 = vpop.permute.xlu0 %520
        %v524 = vsel %vm343, %v331, %v435
        %v525 = vsel %vm343, %v332, %v437
        %vm526 = vcmask 539648
        %v527 = vsel %vm526, %v524, %v441
        %v528 = vsel %vm526, %v525, %v443
        %vm529 = vcmask 809984
        %v530 = vsel %vm529, %v527, %v447
        %v531 = vsel %vm529, %v528, %v449
        %vm532 = vcmask 31744
        %v533 = vsel %vm532, %v447, %v453
        %v534 = vsel %vm532, %v449, %v455
        %vm535 = vcmask 302080
        %v536 = vsel %vm535, %v533, %v459
        %v537 = vsel %vm535, %v534, %v461
        %vm538 = vcmask 572416
        %v539 = vsel %vm538, %v536, %v465
        %v540 = vsel %vm538, %v537, %v467
        %vm541 = vcmask 842752
        %v542 = vsel %vm541, %v539, %v471
        %v543 = vsel %vm541, %v540, %v473
        %vm544 = vcmask 64512
        %v545 = vsel %vm544, %v471, %v477
        %v546 = vsel %vm544, %v473, %v479
        %vm547 = vcmask 334848
        %v548 = vsel %vm547, %v545, %v483
        %v549 = vsel %vm547, %v546, %v485
        %vm550 = vcmask 605184
        %v551 = vsel %vm550, %v548, %v489
        %v552 = vsel %vm550, %v549, %v491
        %vm553 = vcmask 875520
        %v554 = vsel %vm553, %v551, %v495
        %v555 = vsel %vm553, %v552, %v497
        %vm556 = vcmask 97280
        %v557 = vsel %vm556, %v495, %v501
        %v558 = vsel %vm556, %v497, %v503
        %vm559 = vcmask 367616
        %v560 = vsel %vm559, %v557, %v507
        %v561 = vsel %vm559, %v558, %v509
        %vm562 = vcmask 637952
        %v563 = vsel %vm562, %v560, %v513
        %v564 = vsel %vm562, %v561, %v515
        %vm565 = vcmask 908288
        %v566 = vsel %vm565, %v563, %v519
        %v567 = vsel %vm565, %v564, %v521
        %576 = vrot.lane.b32.xlu0 %v530, 16
        %v577 = vpop.permute.xlu0 %576
        %578 = vrot.lane.b32.xlu0 %v542, 16
        %v579 = vpop.permute.xlu0 %578
        %580 = vrot.lane.b32.xlu0 %v554, 16
        %v581 = vpop.permute.xlu0 %580
        %582 = vrot.lane.b32.xlu0 %v566, 16
        %v583 = vpop.permute.xlu0 %582
        %584 = vrot.lane.b32.xlu0 %v519, 16
        %v585 = vpop.permute.xlu0 %584
        %586 = vrot.lane.b32.xlu0 %v531, 16
        %v587 = vpop.permute.xlu0 %586
        %588 = vrot.lane.b32.xlu0 %v543, 16
        %v589 = vpop.permute.xlu0 %588
        %590 = vrot.lane.b32.xlu0 %v555, 16
        %v591 = vpop.permute.xlu0 %590
        %592 = vrot.lane.b32.xlu0 %v567, 16
        %v593 = vpop.permute.xlu0 %592
        %594 = vrot.lane.b32.xlu0 %v521, 16
        %v595 = vpop.permute.xlu0 %594
        %vm596 = vcmask 130048
        %v597 = vsel %vm596, %v577, %v579
        %v598 = vsel %vm596, %v579, %v581
        %v599 = vsel %vm596, %v581, %v583
        %v600 = vsel %vm596, %v583, %v585
        %v601 = vsel %vm596, %v587, %v589
        %v602 = vsel %vm596, %v589, %v591
        %v603 = vsel %vm596, %v591, %v593
        %v604 = vsel %vm596, %v593, %v595
        %v615 = vsel %vm596, %v519, %v577
        %v616 = vsel %vm596, %v521, %v587
        %v617 = vld [vmem:[%s2] sm:$0xff]
        %v618 = vld [vmem:[%s2 + $0x8] sm:$0xff]
        %v619 = vld [vmem:[%s2 + $0x10] sm:$0xff]
        %v620 = vld [vmem:[%s2 + $0x18] sm:$0xff]
        %v621 = vld [vmem:[%s2 + $0x20] sm:$0xff]
        %v622 = vld [vmem:[%s2 + $0x28] sm:$0xff]
        %v623 = vld [vmem:[%s2 + $0x30] sm:$0xff]
        %v624 = vld [vmem:[%s2 + $0x38] sm:$0xff]
        %v625 = vld [vmem:[%s2 + $0x40] sm:$0xff]
        %v626 = vld [vmem:[%s2 + $0x48] sm:$0xff]
        %v628 = vsel %vm596, %v329, 0
        %v631 = vsel %vm596, %v330, 0
        %633 = vmatprep.subr.mxu0 %v618
        %634 = vmatpush1.msra.mxu0 %v617
        %635 = vmatprep.subr.mxu0 %v623
        %636 = vmatpush1.msra.mxu0 %v622
        %637 = vmatprep.subr.mxu0 0.0
        %638 = vmatpush1.msra.mxu0 0.0
        %639 = vmatprep.subr.mxu0 0.0
        %640 = vmatpush1.msra.mxu0 0.0
        %641 = vmatprep.subr.mxu0 0.0
        %642 = vmatpush1.msra.mxu0 0.0
        %643 = vmatprep.subr.mxu0 0.0
        %644 = vmatpush1.msra.mxu0 0.0
        %645 = vmatprep.subr.mxu0 0.0
        %646 = vmatpush1.msra.mxu0 0.0
        %647 = vmatprep.subr.mxu0 0.0
        %648 = vmatpush1.msra.mxu0 0.0
        %649 = vmatprep.subr.mxu0 0.0
        %650 = vmatpush1.msra.mxu0 0.0
        %651 = vmatprep.subr.mxu0 0.0
        %652 = vmatpush1.msra.mxu0 0.0
        %653 = vmatprep.subr.mxu0 0.0
        %654 = vmatpush1.msra.mxu0 0.0
        %655 = vmatprep.subr.mxu0 0.0
        %656 = vmatpush1.msra.mxu0 0.0
        %657 = vmatprep.subr.mxu0 0.0
        %658 = vmatpush1.msra.mxu0 0.0
        %659 = vmatprep.subr.mxu0 0.0
        %660 = vmatpush1.msra.mxu0 0.0
        %661 = vmatprep.subr.mxu0 0.0
        %662 = vmatpush1.msra.mxu0 0.0
        %663 = vmatprep.subr.mxu0 0.0
        %664 = vmatpush1.msra.mxu0 0.0
        %665 = vmatprep.subr.mxu0 0.0
        %666 = vmatpush1.msra.mxu0 0.0
        %667 = vmatprep.subr.mxu0 0.0
        %668 = vmatpush1.msra.mxu0 0.0
        %669 = vmatprep.subr.mxu0 0.0
        %670 = vmatpush1.msra.mxu0 0.0
        %671 = vmatprep.subr.mxu0 0.0
        %672 = vmatpush1.msra.mxu0 0.0
        %673 = vmatprep.subr.mxu0 0.0
        %674 = vmatpush1.msra.mxu0 0.0
        %675 = vmatprep.subr.mxu0 0.0
        %676 = vmatpush1.msra.mxu0 0.0
        %677 = vmatprep.subr.mxu0 0.0
        %678 = vmatpush1.msra.mxu0 0.0
        %679 = vmatprep.subr.mxu0 0.0
        %680 = vmatpush1.msra.mxu0 0.0
        %681 = vmatprep.subr.mxu0 0.0
        %682 = vmatpush1.msra.mxu0 0.0
        %683 = vmatprep.subr.mxu0 0.0
        %684 = vmatpush1.msra.mxu0 0.0
        %685 = vmatprep.subr.mxu0 0.0
        %686 = vmatpush1.msra.mxu0 0.0
        %687 = vmatprep.subr.mxu0 0.0
        %688 = vmatpush1.msra.mxu0 0.0
        %689 = vmatprep.subr.mxu0 0.0
        %690 = vmatpush1.msra.mxu0 0.0
        %691 = vmatprep.subr.mxu0 0.0
        %692 = vmatpush1.msra.mxu0 0.0
        %693 = vmatprep.subr.mxu0 0.0
        %694 = vmatpush1.msra.mxu0 0.0
        %695 = vmatprep.subr.mxu0 0.0
        %696 = vmatpush1.msra.mxu0 0.0
        %697 = vmatprep.mubr.f32.mxu0 0.0
        %698 = vmatmul.mubr.f32.gmra.mrb[0].mxu0 %v628
        %v699 = vpop.f32.mrb[0].mxu0
        %v700 = vadd.f32 0.0, %v699
        %v701 = vpop.f32.mrb[0].mxu0
        %v702 = vadd.f32 0.0, %v701
        %703 = vmatprep.mubr.f32.mxu0 0.0
        %704 = vmatmul.mubr.f32.gmra.mrb[0].mxu0 %v631
        %v705 = vpop.f32.mrb[0].mxu0
        %v706 = vadd.f32 0.0, %v705
        %v707 = vpop.f32.mrb[0].mxu0
        %v708 = vadd.f32 0.0, %v707
        %709 = vdwg.mxu0
        %710 = vmatprep.subr.mxu0 %v620
        %711 = vmatpush1.msra.mxu0 %v619
        %712 = vmatprep.subr.mxu0 %v625
        %713 = vmatpush1.msra.mxu0 %v624
        %714 = vmatprep.subr.mxu0 0.0
        %715 = vmatpush1.msra.mxu0 0.0
        %716 = vmatprep.subr.mxu0 0.0
        %717 = vmatpush1.msra.mxu0 0.0
        %718 = vmatprep.subr.mxu0 0.0
        %719 = vmatpush1.msra.mxu0 0.0
        %720 = vmatprep.subr.mxu0 0.0
        %721 = vmatpush1.msra.mxu0 0.0
        %722 = vmatprep.subr.mxu0 0.0
        %723 = vmatpush1.msra.mxu0 0.0
        %724 = vmatprep.subr.mxu0 0.0
        %725 = vmatpush1.msra.mxu0 0.0
        %726 = vmatprep.subr.mxu0 0.0
        %727 = vmatpush1.msra.mxu0 0.0
        %728 = vmatprep.subr.mxu0 0.0
        %729 = vmatpush1.msra.mxu0 0.0
        %730 = vmatprep.subr.mxu0 0.0
        %731 = vmatpush1.msra.mxu0 0.0
        %732 = vmatprep.subr.mxu0 0.0
        %733 = vmatpush1.msra.mxu0 0.0
        %734 = vmatprep.subr.mxu0 0.0
        %735 = vmatpush1.msra.mxu0 0.0
        %736 = vmatprep.subr.mxu0 0.0
        %737 = vmatpush1.msra.mxu0 0.0
        %738 = vmatprep.subr.mxu0 0.0
        %739 = vmatpush1.msra.mxu0 0.0
        %740 = vmatprep.subr.mxu0 0.0
        %741 = vmatpush1.msra.mxu0 0.0
        %742 = vmatprep.subr.mxu0 0.0
        %743 = vmatpush1.msra.mxu0 0.0
        %744 = vmatprep.subr.mxu0 0.0
        %745 = vmatpush1.msra.mxu0 0.0
        %746 = vmatprep.subr.mxu0 0.0
        %747 = vmatpush1.msra.mxu0 0.0
        %748 = vmatprep.subr.mxu0 0.0
        %749 = vmatpush1.msra.mxu0 0.0
        %750 = vmatprep.subr.mxu0 0.0
        %751 = vmatpush1.msra.mxu0 0.0
        %752 = vmatprep.subr.mxu0 0.0
        %753 = vmatpush1.msra.mxu0 0.0
        %754 = vmatprep.subr.mxu0 0.0
        %755 = vmatpush1.msra.mxu0 0.0
        %756 = vmatprep.subr.mxu0 0.0
        %757 = vmatpush1.msra.mxu0 0.0
        %758 = vmatprep.subr.mxu0 0.0
        %759 = vmatpush1.msra.mxu0 0.0
        %760 = vmatprep.subr.mxu0 0.0
        %761 = vmatpush1.msra.mxu0 0.0
        %762 = vmatprep.subr.mxu0 0.0
        %763 = vmatpush1.msra.mxu0 0.0
        %764 = vmatprep.subr.mxu0 0.0
        %765 = vmatpush1.msra.mxu0 0.0
        %766 = vmatprep.subr.mxu0 0.0
        %767 = vmatpush1.msra.mxu0 0.0
        %768 = vmatprep.subr.mxu0 0.0
        %769 = vmatpush1.msra.mxu0 0.0
        %770 = vmatprep.subr.mxu0 0.0
        %771 = vmatpush1.msra.mxu0 0.0
        %772 = vmatprep.subr.mxu0 0.0
        %773 = vmatpush1.msra.mxu0 0.0
        %774 = vmatprep.mubr.f32.mxu0 0.0
        %775 = vmatmul.mubr.f32.gmra.mrb[0].mxu0 %v628
        %v776 = vpop.f32.mrb[0].mxu0
        %v777 = vadd.f32 0.0, %v776
        %v778 = vpop.f32.mrb[0].mxu0
        %v779 = vadd.f32 0.0, %v778
        %780 = vmatprep.mubr.f32.mxu0 0.0
        %781 = vmatmul.mubr.f32.gmra.mrb[0].mxu0 %v631
        %v782 = vpop.f32.mrb[0].mxu0
        %v783 = vadd.f32 0.0, %v782
        %v784 = vpop.f32.mrb[0].mxu0
        %v785 = vadd.f32 0.0, %v784
        %786 = vdwg.mxu0
        %787 = vmatprep.subr.mxu0 0.0
        %788 = vmatpush1.msra.mxu0 %v621
        %789 = vmatprep.subr.mxu0 0.0
        %790 = vmatpush1.msra.mxu0 %v626
        %791 = vmatprep.subr.mxu0 0.0
        %792 = vmatpush1.msra.mxu0 0.0
        %793 = vmatprep.subr.mxu0 0.0
        %794 = vmatpush1.msra.mxu0 0.0
        %795 = vmatprep.subr.mxu0 0.0
        %796 = vmatpush1.msra.mxu0 0.0
        %797 = vmatprep.subr.mxu0 0.0
        %798 = vmatpush1.msra.mxu0 0.0
        %799 = vmatprep.subr.mxu0 0.0
        %800 = vmatpush1.msra.mxu0 0.0
        %801 = vmatprep.subr.mxu0 0.0
        %802 = vmatpush1.msra.mxu0 0.0
        %803 = vmatprep.subr.mxu0 0.0
        %804 = vmatpush1.msra.mxu0 0.0
        %805 = vmatprep.subr.mxu0 0.0
        %806 = vmatpush1.msra.mxu0 0.0
        %807 = vmatprep.subr.mxu0 0.0
        %808 = vmatpush1.msra.mxu0 0.0
        %809 = vmatprep.subr.mxu0 0.0
        %810 = vmatpush1.msra.mxu0 0.0
        %811 = vmatprep.subr.mxu0 0.0
        %812 = vmatpush1.msra.mxu0 0.0
        %813 = vmatprep.subr.mxu0 0.0
        %814 = vmatpush1.msra.mxu0 0.0
        %815 = vmatprep.subr.mxu0 0.0
        %816 = vmatpush1.msra.mxu0 0.0
        %817 = vmatprep.subr.mxu0 0.0
        %818 = vmatpush1.msra.mxu0 0.0
        %819 = vmatprep.subr.mxu0 0.0
        %820 = vmatpush1.msra.mxu0 0.0
        %821 = vmatprep.subr.mxu0 0.0
        %822 = vmatpush1.msra.mxu0 0.0
        %823 = vmatprep.subr.mxu0 0.0
        %824 = vmatpush1.msra.mxu0 0.0
        %825 = vmatprep.subr.mxu0 0.0
        %826 = vmatpush1.msra.mxu0 0.0
        %827 = vmatprep.subr.mxu0 0.0
        %828 = vmatpush1.msra.mxu0 0.0
        %829 = vmatprep.subr.mxu0 0.0
        %830 = vmatpush1.msra.mxu0 0.0
        %831 = vmatprep.subr.mxu0 0.0
        %832 = vmatpush1.msra.mxu0 0.0
        %833 = vmatprep.subr.mxu0 0.0
        %834 = vmatpush1.msra.mxu0 0.0
        %835 = vmatprep.subr.mxu0 0.0
        %836 = vmatpush1.msra.mxu0 0.0
        %837 = vmatprep.subr.mxu0 0.0
        %838 = vmatpush1.msra.mxu0 0.0
        %839 = vmatprep.subr.mxu0 0.0
        %840 = vmatpush1.msra.mxu0 0.0
        %841 = vmatprep.subr.mxu0 0.0
        %842 = vmatpush1.msra.mxu0 0.0
        %843 = vmatprep.subr.mxu0 0.0
        %844 = vmatpush1.msra.mxu0 0.0
        %845 = vmatprep.subr.mxu0 0.0
        %846 = vmatpush1.msra.mxu0 0.0
        %847 = vmatprep.subr.mxu0 0.0
        %848 = vmatpush1.msra.mxu0 0.0
        %849 = vmatprep.subr.mxu0 0.0
        %850 = vmatpush1.msra.mxu0 0.0
        %851 = vmatprep.mubr.f32.mxu0 0.0
        %852 = vmatmul.mubr.f32.gmra.mrb[0].mxu0 %v628
        %v853 = vpop.f32.mrb[0].mxu0
        %v854 = vadd.f32 0.0, %v853
        %v855 = vpop.f32.mrb[0].mxu0
        %856 = vmatprep.mubr.f32.mxu0 0.0
        %857 = vmatmul.mubr.f32.gmra.mrb[0].mxu0 %v631
        %v858 = vpop.f32.mrb[0].mxu0
        %v859 = vadd.f32 0.0, %v858
        %v860 = vpop.f32.mrb[0].mxu0
        %861 = vdwg.mxu0
        %v862 = vmul.f32 %v700, %v530
        %v863 = vmul.f32 %v702, %v542
        %v864 = vmul.f32 %v777, %v554
        %v865 = vmul.f32 %v779, %v566
        %v866 = vmul.f32 %v854, %v519
        %v867 = vmul.f32 %v706, %v531
        %v868 = vmul.f32 %v708, %v543
        %v869 = vmul.f32 %v783, %v555
        %v870 = vmul.f32 %v785, %v567
        %v871 = vmul.f32 %v859, %v521
        %v872 = vld [vmem:[%s4] sm:$0xff]
        %v873 = vld [vmem:[%s4 + $0x8] sm:$0xff]
        %v874 = vld [vmem:[%s4 + $0x10] sm:$0xff]
        %v875 = vld [vmem:[%s4 + $0x18] sm:$0xff]
        %v876 = vld [vmem:[%s4 + $0x20] sm:$0xff]
        %v877 = vld [vmem:[%s4 + $0x28] sm:$0xff]
        %v878 = vld [vmem:[%s4 + $0x30] sm:$0xff]
        %v879 = vld [vmem:[%s4 + $0x38] sm:$0xff]
        %v880 = vld [vmem:[%s4 + $0x40] sm:$0xff]
        %v881 = vld [vmem:[%s4 + $0x48] sm:$0xff]
        %v882 = vld [vmem:[%s4 + $0x50] sm:$0xff]
        %v883 = vld [vmem:[%s4 + $0x58] sm:$0xff]
        %v884 = vld [vmem:[%s4 + $0x60] sm:$0xff]
        %v885 = vld [vmem:[%s4 + $0x68] sm:$0xff]
        %v886 = vld [vmem:[%s4 + $0x70] sm:$0xff]
        %v887 = vld [vmem:[%s4 + $0x78] sm:$0xff]
        %v888 = vld [vmem:[%s4 + $0x80] sm:$0xff]
        %v889 = vld [vmem:[%s4 + $0x88] sm:$0xff]
        %v890 = vld [vmem:[%s4 + $0x90] sm:$0xff]
        %v891 = vld [vmem:[%s4 + $0x98] sm:$0xff]
        %v892 = vld [vmem:[%s4 + $0xa0] sm:$0xff]
        %v893 = vld [vmem:[%s4 + $0xa8] sm:$0xff]
        %v894 = vld [vmem:[%s4 + $0xb0] sm:$0xff]
        %v895 = vld [vmem:[%s4 + $0xb8] sm:$0xff]
        %v896 = vld [vmem:[%s4 + $0xc0] sm:$0xff]
        %v897 = vld [vmem:[%s4 + $0xc8] sm:$0xff]
        %v898 = vld [vmem:[%s4 + $0xd0] sm:$0xff]
        %v899 = vld [vmem:[%s4 + $0xd8] sm:$0xff]
        %v900 = vld [vmem:[%s4 + $0xe0] sm:$0xff]
        %v901 = vld [vmem:[%s4 + $0xe8] sm:$0xff]
        %v902 = vld [vmem:[%s4 + $0xf0] sm:$0xff]
        %v903 = vld [vmem:[%s4 + $0xf8] sm:$0xff]
        %v904 = vld [vmem:[%s4 + $0x100] sm:$0xff]
        %v905 = vld [vmem:[%s4 + $0x108] sm:$0xff]
        %v906 = vld [vmem:[%s4 + $0x110] sm:$0xff]
        %v907 = vld [vmem:[%s4 + $0x118] sm:$0xff]
        %v908 = vld [vmem:[%s4 + $0x120] sm:$0xff]
        %v909 = vld [vmem:[%s4 + $0x128] sm:$0xff]
        %v910 = vld [vmem:[%s4 + $0x130] sm:$0xff]
        %v911 = vld [vmem:[%s4 + $0x138] sm:$0xff]
        %v912 = vld [vmem:[%s4 + $0x140] sm:$0xff]
        %v913 = vld [vmem:[%s4 + $0x148] sm:$0xff]
        %v914 = vld [vmem:[%s4 + $0x150] sm:$0xff]
        %v915 = vld [vmem:[%s4 + $0x158] sm:$0xff]
        %v916 = vld [vmem:[%s4 + $0x160] sm:$0xff]
        %v917 = vld [vmem:[%s4 + $0x168] sm:$0xff]
        %v918 = vld [vmem:[%s4 + $0x170] sm:$0xff]
        %v919 = vld [vmem:[%s4 + $0x178] sm:$0xff]
        %v920 = vld [vmem:[%s4 + $0x180] sm:$0xff]
        %v921 = vld [vmem:[%s4 + $0x188] sm:$0xff]
        %v922 = vld [vmem:[%s4 + $0x190] sm:$0xff]
        %v923 = vld [vmem:[%s4 + $0x198] sm:$0xff]
        %v924 = vld [vmem:[%s4 + $0x1a0] sm:$0xff]
        %v925 = vld [vmem:[%s4 + $0x1a8] sm:$0xff]
        %v926 = vld [vmem:[%s4 + $0x1b0] sm:$0xff]
        %v927 = vld [vmem:[%s4 + $0x1b8] sm:$0xff]
        %v928 = vld [vmem:[%s4 + $0x1c0] sm:$0xff]
        %v929 = vld [vmem:[%s4 + $0x1c8] sm:$0xff]
        %v930 = vld [vmem:[%s4 + $0x1d0] sm:$0xff]
        %v931 = vld [vmem:[%s4 + $0x1d8] sm:$0xff]
        %v932 = vld [vmem:[%s4 + $0x1e0] sm:$0xff]
        %v933 = vld [vmem:[%s4 + $0x1e8] sm:$0xff]
        %v934 = vld [vmem:[%s4 + $0x1f0] sm:$0xff]
        %v935 = vld [vmem:[%s4 + $0x1f8] sm:$0xff]
        %v936 = vld [vmem:[%s4 + $0x200] sm:$0xff]
        %v937 = vld [vmem:[%s4 + $0x208] sm:$0xff]
        %v939 = vsel %vm596, %v866, 0
        %v942 = vsel %vm596, %v871, 0
        %944 = vmatprep.subr.mxu0 0.0
        %945 = vmatpush1.msra.mxu0 %v872
        %946 = vmatprep.subr.mxu0 0.0
        %947 = vmatpush1.msra.mxu0 %v873
        %948 = vmatprep.subr.mxu0 0.0
        %949 = vmatpush1.msra.mxu0 %v874
        %950 = vmatprep.subr.mxu0 0.0
        %951 = vmatpush1.msra.mxu0 %v875
        %952 = vmatprep.subr.mxu0 0.0
        %953 = vmatpush1.msra.mxu0 %v876
        %954 = vmatprep.subr.mxu0 0.0
        %955 = vmatpush1.msra.mxu0 %v877
        %956 = vmatprep.subr.mxu0 0.0
        %957 = vmatpush1.msra.mxu0 %v878
        %958 = vmatprep.subr.mxu0 0.0
        %959 = vmatpush1.msra.mxu0 %v879
        %960 = vmatprep.subr.mxu0 0.0
        %961 = vmatpush1.msra.mxu0 %v880
        %962 = vmatprep.subr.mxu0 0.0
        %963 = vmatpush1.msra.mxu0 %v881
        %964 = vmatprep.subr.mxu0 0.0
        %965 = vmatpush1.msra.mxu0 %v882
        %966 = vmatprep.subr.mxu0 0.0
        %967 = vmatpush1.msra.mxu0 %v883
        %968 = vmatprep.subr.mxu0 0.0
        %969 = vmatpush1.msra.mxu0 %v884
        %970 = vmatprep.subr.mxu0 0.0
        %971 = vmatpush1.msra.mxu0 %v885
        %972 = vmatprep.subr.mxu0 0.0
        %973 = vmatpush1.msra.mxu0 %v886
        %974 = vmatprep.subr.mxu0 0.0
        %975 = vmatpush1.msra.mxu0 %v887
        %976 = vmatprep.subr.mxu0 0.0
        %977 = vmatpush1.msra.mxu0 %v888
        %978 = vmatprep.subr.mxu0 0.0
        %979 = vmatpush1.msra.mxu0 %v889
        %980 = vmatprep.subr.mxu0 0.0
        %981 = vmatpush1.msra.mxu0 %v890
        %982 = vmatprep.subr.mxu0 0.0
        %983 = vmatpush1.msra.mxu0 %v891
        %984 = vmatprep.subr.mxu0 0.0
        %985 = vmatpush1.msra.mxu0 %v892
        %986 = vmatprep.subr.mxu0 0.0
        %987 = vmatpush1.msra.mxu0 %v893
        %988 = vmatprep.subr.mxu0 0.0
        %989 = vmatpush1.msra.mxu0 %v894
        %990 = vmatprep.subr.mxu0 0.0
        %991 = vmatpush1.msra.mxu0 %v895
        %992 = vmatprep.subr.mxu0 0.0
        %993 = vmatpush1.msra.mxu0 %v896
        %994 = vmatprep.subr.mxu0 0.0
        %995 = vmatpush1.msra.mxu0 %v897
        %996 = vmatprep.subr.mxu0 0.0
        %997 = vmatpush1.msra.mxu0 %v898
        %998 = vmatprep.subr.mxu0 0.0
        %999 = vmatpush1.msra.mxu0 %v899
        %1000 = vmatprep.subr.mxu0 0.0
        %1001 = vmatpush1.msra.mxu0 %v900
        %1002 = vmatprep.subr.mxu0 0.0
        %1003 = vmatpush1.msra.mxu0 %v901
        %1004 = vmatprep.subr.mxu0 0.0
        %1005 = vmatpush1.msra.mxu0 %v902
        %1006 = vmatprep.subr.mxu0 0.0
        %1007 = vmatpush1.msra.mxu0 %v903
        %1008 = vmatprep.mubr.f32.mxu0 %v863
        %1009 = vmatmul.mubr.f32.gmra.mrb[0].mxu0 %v862
        %v1010 = vpop.f32.mrb[0].mxu0
        %v1011 = vadd.f32 %v424, %v1010
        %v1012 = vpop.f32.mrb[0].mxu0
        %1013 = vmatprep.mubr.f32.mxu0 %v868
        %1014 = vmatmul.mubr.f32.gmra.mrb[0].mxu0 %v867
        %v1015 = vpop.f32.mrb[0].mxu0
        %v1016 = vadd.f32 %v430, %v1015
        %v1017 = vpop.f32.mrb[0].mxu0
        %1018 = vdwg.mxu0
        %1019 = vmatprep.subr.mxu0 0.0
        %1020 = vmatpush1.msra.mxu0 %v904
        %1021 = vmatprep.subr.mxu0 0.0
        %1022 = vmatpush1.msra.mxu0 %v905
        %1023 = vmatprep.subr.mxu0 0.0
        %1024 = vmatpush1.msra.mxu0 %v906
        %1025 = vmatprep.subr.mxu0 0.0
        %1026 = vmatpush1.msra.mxu0 %v907
        %1027 = vmatprep.subr.mxu0 0.0
        %1028 = vmatpush1.msra.mxu0 %v908
        %1029 = vmatprep.subr.mxu0 0.0
        %1030 = vmatpush1.msra.mxu0 %v909
        %1031 = vmatprep.subr.mxu0 0.0
        %1032 = vmatpush1.msra.mxu0 %v910
        %1033 = vmatprep.subr.mxu0 0.0
        %1034 = vmatpush1.msra.mxu0 %v911
        %1035 = vmatprep.subr.mxu0 0.0
        %1036 = vmatpush1.msra.mxu0 %v912
        %1037 = vmatprep.subr.mxu0 0.0
        %1038 = vmatpush1.msra.mxu0 %v913
        %1039 = vmatprep.subr.mxu0 0.0
        %1040 = vmatpush1.msra.mxu0 %v914
        %1041 = vmatprep.subr.mxu0 0.0
        %1042 = vmatpush1.msra.mxu0 %v915
        %1043 = vmatprep.subr.mxu0 0.0
        %1044 = vmatpush1.msra.mxu0 %v916
        %1045 = vmatprep.subr.mxu0 0.0
        %1046 = vmatpush1.msra.mxu0 %v917
        %1047 = vmatprep.subr.mxu0 0.0
        %1048 = vmatpush1.msra.mxu0 %v918
        %1049 = vmatprep.subr.mxu0 0.0
        %1050 = vmatpush1.msra.mxu0 %v919
        %1051 = vmatprep.subr.mxu0 0.0
        %1052 = vmatpush1.msra.mxu0 %v920
        %1053 = vmatprep.subr.mxu0 0.0
        %1054 = vmatpush1.msra.mxu0 %v921
        %1055 = vmatprep.subr.mxu0 0.0
        %1056 = vmatpush1.msra.mxu0 %v922
        %1057 = vmatprep.subr.mxu0 0.0
        %1058 = vmatpush1.msra.mxu0 %v923
        %1059 = vmatprep.subr.mxu0 0.0
        %1060 = vmatpush1.msra.mxu0 %v924
        %1061 = vmatprep.subr.mxu0 0.0
        %1062 = vmatpush1.msra.mxu0 %v925
        %1063 = vmatprep.subr.mxu0 0.0
        %1064 = vmatpush1.msra.mxu0 %v926
        %1065 = vmatprep.subr.mxu0 0.0
        %1066 = vmatpush1.msra.mxu0 %v927
        %1067 = vmatprep.subr.mxu0 0.0
        %1068 = vmatpush1.msra.mxu0 %v928
        %1069 = vmatprep.subr.mxu0 0.0
        %1070 = vmatpush1.msra.mxu0 %v929
        %1071 = vmatprep.subr.mxu0 0.0
        %1072 = vmatpush1.msra.mxu0 %v930
        %1073 = vmatprep.subr.mxu0 0.0
        %1074 = vmatpush1.msra.mxu0 %v931
        %1075 = vmatprep.subr.mxu0 0.0
        %1076 = vmatpush1.msra.mxu0 %v932
        %1077 = vmatprep.subr.mxu0 0.0
        %1078 = vmatpush1.msra.mxu0 %v933
        %1079 = vmatprep.subr.mxu0 0.0
        %1080 = vmatpush1.msra.mxu0 %v934
        %1081 = vmatprep.subr.mxu0 0.0
        %1082 = vmatpush1.msra.mxu0 %v935
        %1083 = vmatprep.mubr.f32.mxu0 %v865
        %1084 = vmatmul.mubr.f32.gmra.mrb[0].mxu0 %v864
        %v1085 = vpop.f32.mrb[0].mxu0
        %v1086 = vadd.f32 %v1011, %v1085
        %v1087 = vpop.f32.mrb[0].mxu0
        %1088 = vmatprep.mubr.f32.mxu0 %v870
        %1089 = vmatmul.mubr.f32.gmra.mrb[0].mxu0 %v869
        %v1090 = vpop.f32.mrb[0].mxu0
        %v1091 = vadd.f32 %v1016, %v1090
        %v1092 = vpop.f32.mrb[0].mxu0
        %1093 = vdwg.mxu0
        %1094 = vmatprep.subr.mxu0 0.0
        %1095 = vmatpush1.msra.mxu0 %v936
        %1096 = vmatprep.subr.mxu0 0.0
        %1097 = vmatpush1.msra.mxu0 %v937
        %1098 = vmatprep.subr.mxu0 0.0
        %1099 = vmatpush1.msra.mxu0 0.0
        %1100 = vmatprep.subr.mxu0 0.0
        %1101 = vmatpush1.msra.mxu0 0.0
        %1102 = vmatprep.subr.mxu0 0.0
        %1103 = vmatpush1.msra.mxu0 0.0
        %1104 = vmatprep.subr.mxu0 0.0
        %1105 = vmatpush1.msra.mxu0 0.0
        %1106 = vmatprep.subr.mxu0 0.0
        %1107 = vmatpush1.msra.mxu0 0.0
        %1108 = vmatprep.subr.mxu0 0.0
        %1109 = vmatpush1.msra.mxu0 0.0
        %1110 = vmatprep.subr.mxu0 0.0
        %1111 = vmatpush1.msra.mxu0 0.0
        %1112 = vmatprep.subr.mxu0 0.0
        %1113 = vmatpush1.msra.mxu0 0.0
        %1114 = vmatprep.subr.mxu0 0.0
        %1115 = vmatpush1.msra.mxu0 0.0
        %1116 = vmatprep.subr.mxu0 0.0
        %1117 = vmatpush1.msra.mxu0 0.0
        %1118 = vmatprep.subr.mxu0 0.0
        %1119 = vmatpush1.msra.mxu0 0.0
        %1120 = vmatprep.subr.mxu0 0.0
        %1121 = vmatpush1.msra.mxu0 0.0
        %1122 = vmatprep.subr.mxu0 0.0
        %1123 = vmatpush1.msra.mxu0 0.0
        %1124 = vmatprep.subr.mxu0 0.0
        %1125 = vmatpush1.msra.mxu0 0.0
        %1126 = vmatprep.subr.mxu0 0.0
        %1127 = vmatpush1.msra.mxu0 0.0
        %1128 = vmatprep.subr.mxu0 0.0
        %1129 = vmatpush1.msra.mxu0 0.0
        %1130 = vmatprep.subr.mxu0 0.0
        %1131 = vmatpush1.msra.mxu0 0.0
        %1132 = vmatprep.subr.mxu0 0.0
        %1133 = vmatpush1.msra.mxu0 0.0
        %1134 = vmatprep.subr.mxu0 0.0
        %1135 = vmatpush1.msra.mxu0 0.0
        %1136 = vmatprep.subr.mxu0 0.0
        %1137 = vmatpush1.msra.mxu0 0.0
        %1138 = vmatprep.subr.mxu0 0.0
        %1139 = vmatpush1.msra.mxu0 0.0
        %1140 = vmatprep.subr.mxu0 0.0
        %1141 = vmatpush1.msra.mxu0 0.0
        %1142 = vmatprep.subr.mxu0 0.0
        %1143 = vmatpush1.msra.mxu0 0.0
        %1144 = vmatprep.subr.mxu0 0.0
        %1145 = vmatpush1.msra.mxu0 0.0
        %1146 = vmatprep.subr.mxu0 0.0
        %1147 = vmatpush1.msra.mxu0 0.0
        %1148 = vmatprep.subr.mxu0 0.0
        %1149 = vmatpush1.msra.mxu0 0.0
        %1150 = vmatprep.subr.mxu0 0.0
        %1151 = vmatpush1.msra.mxu0 0.0
        %1152 = vmatprep.subr.mxu0 0.0
        %1153 = vmatpush1.msra.mxu0 0.0
        %1154 = vmatprep.subr.mxu0 0.0
        %1155 = vmatpush1.msra.mxu0 0.0
        %1156 = vmatprep.subr.mxu0 0.0
        %1157 = vmatpush1.msra.mxu0 0.0
        %1158 = vmatprep.mubr.f32.mxu0 0.0
        %1159 = vmatmul.mubr.f32.gmra.mrb[0].mxu0 %v939
        %v1160 = vpop.f32.mrb[0].mxu0
        %v1161 = vadd.f32 %v1086, %v1160
        %v1162 = vpop.f32.mrb[0].mxu0
        %1163 = vmatprep.mubr.f32.mxu0 0.0
        %1164 = vmatmul.mubr.f32.gmra.mrb[0].mxu0 %v942
        %v1165 = vpop.f32.mrb[0].mxu0
        %v1166 = vadd.f32 %v1091, %v1165
        %v1167 = vpop.f32.mrb[0].mxu0
        %1168 = vdwg.mxu0
        %v1169 = vmax.f32 %v1161, 0.0
        %v1170 = vmax.f32 %v1166, 0.0
        %v1171 = vld [vmem:[%s3] sm:$0xff]
        %v1172 = vld [vmem:[%s3 + $0x8] sm:$0xff]
        %v1173 = vld [vmem:[%s3 + $0x10] sm:$0xff]
        %v1174 = vld [vmem:[%s3 + $0x18] sm:$0xff]
        %v1175 = vld [vmem:[%s3 + $0x20] sm:$0xff]
        %v1176 = vld [vmem:[%s3 + $0x28] sm:$0xff]
        %v1177 = vld [vmem:[%s3 + $0x30] sm:$0xff]
        %v1178 = vld [vmem:[%s3 + $0x38] sm:$0xff]
        %v1179 = vld [vmem:[%s3 + $0x40] sm:$0xff]
        %v1180 = vld [vmem:[%s3 + $0x48] sm:$0xff]
        %v1181 = vld [vmem:[%s3 + $0x50] sm:$0xff]
        %v1182 = vld [vmem:[%s3 + $0x58] sm:$0xff]
        %v1183 = vld [vmem:[%s3 + $0x60] sm:$0xff]
        %v1184 = vld [vmem:[%s3 + $0x68] sm:$0xff]
        %v1185 = vld [vmem:[%s3 + $0x70] sm:$0xff]
        %v1186 = vld [vmem:[%s3 + $0x78] sm:$0xff]
        %v1187 = vld [vmem:[%s3 + $0x80] sm:$0xff]
        %v1188 = vld [vmem:[%s3 + $0x88] sm:$0xff]
        %v1189 = vld [vmem:[%s3 + $0x90] sm:$0xff]
        %v1190 = vld [vmem:[%s3 + $0x98] sm:$0xff]
        %v1191 = vld [vmem:[%s3 + $0xa0] sm:$0xff]
        %v1192 = vld [vmem:[%s3 + $0xa8] sm:$0xff]
        %v1193 = vld [vmem:[%s3 + $0xb0] sm:$0xff]
        %v1194 = vld [vmem:[%s3 + $0xb8] sm:$0xff]
        %v1195 = vld [vmem:[%s3 + $0xc0] sm:$0xff]
        %v1196 = vld [vmem:[%s3 + $0xc8] sm:$0xff]
        %v1197 = vld [vmem:[%s3 + $0xd0] sm:$0xff]
        %v1198 = vld [vmem:[%s3 + $0xd8] sm:$0xff]
        %v1199 = vld [vmem:[%s3 + $0xe0] sm:$0xff]
        %v1200 = vld [vmem:[%s3 + $0xe8] sm:$0xff]
        %v1201 = vld [vmem:[%s3 + $0xf0] sm:$0xff]
        %v1202 = vld [vmem:[%s3 + $0xf8] sm:$0xff]
        %v1203 = vld [vmem:[%s3 + $0x100] sm:$0xff]
        %v1204 = vld [vmem:[%s3 + $0x108] sm:$0xff]
        %v1205 = vld [vmem:[%s3 + $0x110] sm:$0xff]
        %v1206 = vld [vmem:[%s3 + $0x118] sm:$0xff]
        %vm1207 = vcmask 261120
        %v1209 = vsel %vm1207, %v1169, 0
        %v1212 = vsel %vm1207, %v1170, 0
        %1214 = vmatprep.subr.mxu0 %v1172
        %1215 = vmatpush1.msra.mxu0 %v1171
        %1216 = vmatprep.subr.mxu0 %v1181
        %1217 = vmatpush1.msra.mxu0 %v1180
        %1218 = vmatprep.subr.mxu0 %v1190
        %1219 = vmatpush1.msra.mxu0 %v1189
        %1220 = vmatprep.subr.mxu0 %v1199
        %1221 = vmatpush1.msra.mxu0 %v1198
        %1222 = vmatprep.subr.mxu0 0.0
        %1223 = vmatpush1.msra.mxu0 0.0
        %1224 = vmatprep.subr.mxu0 0.0
        %1225 = vmatpush1.msra.mxu0 0.0
        %1226 = vmatprep.subr.mxu0 0.0
        %1227 = vmatpush1.msra.mxu0 0.0
        %1228 = vmatprep.subr.mxu0 0.0
        %1229 = vmatpush1.msra.mxu0 0.0
        %1230 = vmatprep.subr.mxu0 0.0
        %1231 = vmatpush1.msra.mxu0 0.0
        %1232 = vmatprep.subr.mxu0 0.0
        %1233 = vmatpush1.msra.mxu0 0.0
        %1234 = vmatprep.subr.mxu0 0.0
        %1235 = vmatpush1.msra.mxu0 0.0
        %1236 = vmatprep.subr.mxu0 0.0
        %1237 = vmatpush1.msra.mxu0 0.0
        %1238 = vmatprep.subr.mxu0 0.0
        %1239 = vmatpush1.msra.mxu0 0.0
        %1240 = vmatprep.subr.mxu0 0.0
        %1241 = vmatpush1.msra.mxu0 0.0
        %1242 = vmatprep.subr.mxu0 0.0
        %1243 = vmatpush1.msra.mxu0 0.0
        %1244 = vmatprep.subr.mxu0 0.0
        %1245 = vmatpush1.msra.mxu0 0.0
        %1246 = vmatprep.subr.mxu0 0.0
        %1247 = vmatpush1.msra.mxu0 0.0
        %1248 = vmatprep.subr.mxu0 0.0
        %1249 = vmatpush1.msra.mxu0 0.0
        %1250 = vmatprep.subr.mxu0 0.0
        %1251 = vmatpush1.msra.mxu0 0.0
        %1252 = vmatprep.subr.mxu0 0.0
        %1253 = vmatpush1.msra.mxu0 0.0
        %1254 = vmatprep.subr.mxu0 0.0
        %1255 = vmatpush1.msra.mxu0 0.0
        %1256 = vmatprep.subr.mxu0 0.0
        %1257 = vmatpush1.msra.mxu0 0.0
        %1258 = vmatprep.subr.mxu0 0.0
        %1259 = vmatpush1.msra.mxu0 0.0
        %1260 = vmatprep.subr.mxu0 0.0
        %1261 = vmatpush1.msra.mxu0 0.0
        %1262 = vmatprep.subr.mxu0 0.0
        %1263 = vmatpush1.msra.mxu0 0.0
        %1264 = vmatprep.subr.mxu0 0.0
        %1265 = vmatpush1.msra.mxu0 0.0
        %1266 = vmatprep.subr.mxu0 0.0
        %1267 = vmatpush1.msra.mxu0 0.0
        %1268 = vmatprep.subr.mxu0 0.0
        %1269 = vmatpush1.msra.mxu0 0.0
        %1270 = vmatprep.subr.mxu0 0.0
        %1271 = vmatpush1.msra.mxu0 0.0
        %1272 = vmatprep.subr.mxu0 0.0
        %1273 = vmatpush1.msra.mxu0 0.0
        %1274 = vmatprep.subr.mxu0 0.0
        %1275 = vmatpush1.msra.mxu0 0.0
        %1276 = vmatprep.subr.mxu0 0.0
        %1277 = vmatpush1.msra.mxu0 0.0
        %1278 = vmatprep.mubr.f32.mxu0 0.0
        %1279 = vmatmul.mubr.f32.gmra.mrb[0].mxu0 %v1209
        %v1280 = vpop.f32.mrb[0].mxu0
        %v1281 = vadd.f32 0.0, %v1280
        %v1282 = vpop.f32.mrb[0].mxu0
        %v1283 = vadd.f32 0.0, %v1282
        %1284 = vmatprep.mubr.f32.mxu0 0.0
        %1285 = vmatmul.mubr.f32.gmra.mrb[0].mxu0 %v1212
        %v1286 = vpop.f32.mrb[0].mxu0
        %v1287 = vadd.f32 0.0, %v1286
        %v1288 = vpop.f32.mrb[0].mxu0
        %v1289 = vadd.f32 0.0, %v1288
        %1290 = vdwg.mxu0
        %1291 = vmatprep.subr.mxu0 %v1174
        %1292 = vmatpush1.msra.mxu0 %v1173
        %1293 = vmatprep.subr.mxu0 %v1183
        %1294 = vmatpush1.msra.mxu0 %v1182
        %1295 = vmatprep.subr.mxu0 %v1192
        %1296 = vmatpush1.msra.mxu0 %v1191
        %1297 = vmatprep.subr.mxu0 %v1201
        %1298 = vmatpush1.msra.mxu0 %v1200
        %1299 = vmatprep.subr.mxu0 0.0
        %1300 = vmatpush1.msra.mxu0 0.0
        %1301 = vmatprep.subr.mxu0 0.0
        %1302 = vmatpush1.msra.mxu0 0.0
        %1303 = vmatprep.subr.mxu0 0.0
        %1304 = vmatpush1.msra.mxu0 0.0
        %1305 = vmatprep.subr.mxu0 0.0
        %1306 = vmatpush1.msra.mxu0 0.0
        %1307 = vmatprep.subr.mxu0 0.0
        %1308 = vmatpush1.msra.mxu0 0.0
        %1309 = vmatprep.subr.mxu0 0.0
        %1310 = vmatpush1.msra.mxu0 0.0
        %1311 = vmatprep.subr.mxu0 0.0
        %1312 = vmatpush1.msra.mxu0 0.0
        %1313 = vmatprep.subr.mxu0 0.0
        %1314 = vmatpush1.msra.mxu0 0.0
        %1315 = vmatprep.subr.mxu0 0.0
        %1316 = vmatpush1.msra.mxu0 0.0
        %1317 = vmatprep.subr.mxu0 0.0
        %1318 = vmatpush1.msra.mxu0 0.0
        %1319 = vmatprep.subr.mxu0 0.0
        %1320 = vmatpush1.msra.mxu0 0.0
        %1321 = vmatprep.subr.mxu0 0.0
        %1322 = vmatpush1.msra.mxu0 0.0
        %1323 = vmatprep.subr.mxu0 0.0
        %1324 = vmatpush1.msra.mxu0 0.0
        %1325 = vmatprep.subr.mxu0 0.0
        %1326 = vmatpush1.msra.mxu0 0.0
        %1327 = vmatprep.subr.mxu0 0.0
        %1328 = vmatpush1.msra.mxu0 0.0
        %1329 = vmatprep.subr.mxu0 0.0
        %1330 = vmatpush1.msra.mxu0 0.0
        %1331 = vmatprep.subr.mxu0 0.0
        %1332 = vmatpush1.msra.mxu0 0.0
        %1333 = vmatprep.subr.mxu0 0.0
        %1334 = vmatpush1.msra.mxu0 0.0
        %1335 = vmatprep.subr.mxu0 0.0
        %1336 = vmatpush1.msra.mxu0 0.0
        %1337 = vmatprep.subr.mxu0 0.0
        %1338 = vmatpush1.msra.mxu0 0.0
        %1339 = vmatprep.subr.mxu0 0.0
        %1340 = vmatpush1.msra.mxu0 0.0
        %1341 = vmatprep.subr.mxu0 0.0
        %1342 = vmatpush1.msra.mxu0 0.0
        %1343 = vmatprep.subr.mxu0 0.0
        %1344 = vmatpush1.msra.mxu0 0.0
        %1345 = vmatprep.subr.mxu0 0.0
        %1346 = vmatpush1.msra.mxu0 0.0
        %1347 = vmatprep.subr.mxu0 0.0
        %1348 = vmatpush1.msra.mxu0 0.0
        %1349 = vmatprep.subr.mxu0 0.0
        %1350 = vmatpush1.msra.mxu0 0.0
        %1351 = vmatprep.subr.mxu0 0.0
        %1352 = vmatpush1.msra.mxu0 0.0
        %1353 = vmatprep.subr.mxu0 0.0
        %1354 = vmatpush1.msra.mxu0 0.0
        %1355 = vmatprep.mubr.f32.mxu0 0.0
        %1356 = vmatmul.mubr.f32.gmra.mrb[0].mxu0 %v1209
        %v1357 = vpop.f32.mrb[0].mxu0
        %v1358 = vadd.f32 0.0, %v1357
        %v1359 = vpop.f32.mrb[0].mxu0
        %v1360 = vadd.f32 0.0, %v1359
        %1361 = vmatprep.mubr.f32.mxu0 0.0
        %1362 = vmatmul.mubr.f32.gmra.mrb[0].mxu0 %v1212
        %v1363 = vpop.f32.mrb[0].mxu0
        %v1364 = vadd.f32 0.0, %v1363
        %v1365 = vpop.f32.mrb[0].mxu0
        %v1366 = vadd.f32 0.0, %v1365
        %1367 = vdwg.mxu0
        %1368 = vmatprep.subr.mxu0 %v1176
        %1369 = vmatpush1.msra.mxu0 %v1175
        %1370 = vmatprep.subr.mxu0 %v1185
        %1371 = vmatpush1.msra.mxu0 %v1184
        %1372 = vmatprep.subr.mxu0 %v1194
        %1373 = vmatpush1.msra.mxu0 %v1193
        %1374 = vmatprep.subr.mxu0 %v1203
        %1375 = vmatpush1.msra.mxu0 %v1202
        %1376 = vmatprep.subr.mxu0 0.0
        %1377 = vmatpush1.msra.mxu0 0.0
        %1378 = vmatprep.subr.mxu0 0.0
        %1379 = vmatpush1.msra.mxu0 0.0
        %1380 = vmatprep.subr.mxu0 0.0
        %1381 = vmatpush1.msra.mxu0 0.0
        %1382 = vmatprep.subr.mxu0 0.0
        %1383 = vmatpush1.msra.mxu0 0.0
        %1384 = vmatprep.subr.mxu0 0.0
        %1385 = vmatpush1.msra.mxu0 0.0
        %1386 = vmatprep.subr.mxu0 0.0
        %1387 = vmatpush1.msra.mxu0 0.0
        %1388 = vmatprep.subr.mxu0 0.0
        %1389 = vmatpush1.msra.mxu0 0.0
        %1390 = vmatprep.subr.mxu0 0.0
        %1391 = vmatpush1.msra.mxu0 0.0
        %1392 = vmatprep.subr.mxu0 0.0
        %1393 = vmatpush1.msra.mxu0 0.0
        %1394 = vmatprep.subr.mxu0 0.0
        %1395 = vmatpush1.msra.mxu0 0.0
        %1396 = vmatprep.subr.mxu0 0.0
        %1397 = vmatpush1.msra.mxu0 0.0
        %1398 = vmatprep.subr.mxu0 0.0
        %1399 = vmatpush1.msra.mxu0 0.0
        %1400 = vmatprep.subr.mxu0 0.0
        %1401 = vmatpush1.msra.mxu0 0.0
        %1402 = vmatprep.subr.mxu0 0.0
        %1403 = vmatpush1.msra.mxu0 0.0
        %1404 = vmatprep.subr.mxu0 0.0
        %1405 = vmatpush1.msra.mxu0 0.0
        %1406 = vmatprep.subr.mxu0 0.0
        %1407 = vmatpush1.msra.mxu0 0.0
        %1408 = vmatprep.subr.mxu0 0.0
        %1409 = vmatpush1.msra.mxu0 0.0
        %1410 = vmatprep.subr.mxu0 0.0
        %1411 = vmatpush1.msra.mxu0 0.0
        %1412 = vmatprep.subr.mxu0 0.0
        %1413 = vmatpush1.msra.mxu0 0.0
        %1414 = vmatprep.subr.mxu0 0.0
        %1415 = vmatpush1.msra.mxu0 0.0
        %1416 = vmatprep.subr.mxu0 0.0
        %1417 = vmatpush1.msra.mxu0 0.0
        %1418 = vmatprep.subr.mxu0 0.0
        %1419 = vmatpush1.msra.mxu0 0.0
        %1420 = vmatprep.subr.mxu0 0.0
        %1421 = vmatpush1.msra.mxu0 0.0
        %1422 = vmatprep.subr.mxu0 0.0
        %1423 = vmatpush1.msra.mxu0 0.0
        %1424 = vmatprep.subr.mxu0 0.0
        %1425 = vmatpush1.msra.mxu0 0.0
        %1426 = vmatprep.subr.mxu0 0.0
        %1427 = vmatpush1.msra.mxu0 0.0
        %1428 = vmatprep.subr.mxu0 0.0
        %1429 = vmatpush1.msra.mxu0 0.0
        %1430 = vmatprep.subr.mxu0 0.0
        %1431 = vmatpush1.msra.mxu0 0.0
        %1432 = vmatprep.mubr.f32.mxu0 0.0
        %1433 = vmatmul.mubr.f32.gmra.mrb[0].mxu0 %v1209
        %v1434 = vpop.f32.mrb[0].mxu0
        %v1435 = vadd.f32 0.0, %v1434
        %v1436 = vpop.f32.mrb[0].mxu0
        %v1437 = vadd.f32 0.0, %v1436
        %1438 = vmatprep.mubr.f32.mxu0 0.0
        %1439 = vmatmul.mubr.f32.gmra.mrb[0].mxu0 %v1212
        %v1440 = vpop.f32.mrb[0].mxu0
        %v1441 = vadd.f32 0.0, %v1440
        %v1442 = vpop.f32.mrb[0].mxu0
        %v1443 = vadd.f32 0.0, %v1442
        %1444 = vdwg.mxu0
        %1445 = vmatprep.subr.mxu0 %v1178
        %1446 = vmatpush1.msra.mxu0 %v1177
        %1447 = vmatprep.subr.mxu0 %v1187
        %1448 = vmatpush1.msra.mxu0 %v1186
        %1449 = vmatprep.subr.mxu0 %v1196
        %1450 = vmatpush1.msra.mxu0 %v1195
        %1451 = vmatprep.subr.mxu0 %v1205
        %1452 = vmatpush1.msra.mxu0 %v1204
        %1453 = vmatprep.subr.mxu0 0.0
        %1454 = vmatpush1.msra.mxu0 0.0
        %1455 = vmatprep.subr.mxu0 0.0
        %1456 = vmatpush1.msra.mxu0 0.0
        %1457 = vmatprep.subr.mxu0 0.0
        %1458 = vmatpush1.msra.mxu0 0.0
        %1459 = vmatprep.subr.mxu0 0.0
        %1460 = vmatpush1.msra.mxu0 0.0
        %1461 = vmatprep.subr.mxu0 0.0
        %1462 = vmatpush1.msra.mxu0 0.0
        %1463 = vmatprep.subr.mxu0 0.0
        %1464 = vmatpush1.msra.mxu0 0.0
        %1465 = vmatprep.subr.mxu0 0.0
        %1466 = vmatpush1.msra.mxu0 0.0
        %1467 = vmatprep.subr.mxu0 0.0
        %1468 = vmatpush1.msra.mxu0 0.0
        %1469 = vmatprep.subr.mxu0 0.0
        %1470 = vmatpush1.msra.mxu0 0.0
        %1471 = vmatprep.subr.mxu0 0.0
        %1472 = vmatpush1.msra.mxu0 0.0
        %1473 = vmatprep.subr.mxu0 0.0
        %1474 = vmatpush1.msra.mxu0 0.0
        %1475 = vmatprep.subr.mxu0 0.0
        %1476 = vmatpush1.msra.mxu0 0.0
        %1477 = vmatprep.subr.mxu0 0.0
        %1478 = vmatpush1.msra.mxu0 0.0
        %1479 = vmatprep.subr.mxu0 0.0
        %1480 = vmatpush1.msra.mxu0 0.0
        %1481 = vmatprep.subr.mxu0 0.0
        %1482 = vmatpush1.msra.mxu0 0.0
        %1483 = vmatprep.subr.mxu0 0.0
        %1484 = vmatpush1.msra.mxu0 0.0
        %1485 = vmatprep.subr.mxu0 0.0
        %1486 = vmatpush1.msra.mxu0 0.0
        %1487 = vmatprep.subr.mxu0 0.0
        %1488 = vmatpush1.msra.mxu0 0.0
        %1489 = vmatprep.subr.mxu0 0.0
        %1490 = vmatpush1.msra.mxu0 0.0
        %1491 = vmatprep.subr.mxu0 0.0
        %1492 = vmatpush1.msra.mxu0 0.0
        %1493 = vmatprep.subr.mxu0 0.0
        %1494 = vmatpush1.msra.mxu0 0.0
        %1495 = vmatprep.subr.mxu0 0.0
        %1496 = vmatpush1.msra.mxu0 0.0
        %1497 = vmatprep.subr.mxu0 0.0
        %1498 = vmatpush1.msra.mxu0 0.0
        %1499 = vmatprep.subr.mxu0 0.0
        %1500 = vmatpush1.msra.mxu0 0.0
        %1501 = vmatprep.subr.mxu0 0.0
        %1502 = vmatpush1.msra.mxu0 0.0
        %1503 = vmatprep.subr.mxu0 0.0
        %1504 = vmatpush1.msra.mxu0 0.0
        %1505 = vmatprep.subr.mxu0 0.0
        %1506 = vmatpush1.msra.mxu0 0.0
        %1507 = vmatprep.subr.mxu0 0.0
        %1508 = vmatpush1.msra.mxu0 0.0
        %1509 = vmatprep.mubr.f32.mxu0 0.0
        %1510 = vmatmul.mubr.f32.gmra.mrb[0].mxu0 %v1209
        %v1511 = vpop.f32.mrb[0].mxu0
        %v1512 = vadd.f32 0.0, %v1511
        %v1513 = vpop.f32.mrb[0].mxu0
        %v1514 = vadd.f32 0.0, %v1513
        %1515 = vmatprep.mubr.f32.mxu0 0.0
        %1516 = vmatmul.mubr.f32.gmra.mrb[0].mxu0 %v1212
        %v1517 = vpop.f32.mrb[0].mxu0
        %v1518 = vadd.f32 0.0, %v1517
        %v1519 = vpop.f32.mrb[0].mxu0
        %v1520 = vadd.f32 0.0, %v1519
        %1521 = vdwg.mxu0
        %1522 = vmatprep.subr.mxu0 0.0
        %1523 = vmatpush1.msra.mxu0 %v1179
        %1524 = vmatprep.subr.mxu0 0.0
        %1525 = vmatpush1.msra.mxu0 %v1188
        %1526 = vmatprep.subr.mxu0 0.0
        %1527 = vmatpush1.msra.mxu0 %v1197
        %1528 = vmatprep.subr.mxu0 0.0
        %1529 = vmatpush1.msra.mxu0 %v1206
        %1530 = vmatprep.subr.mxu0 0.0
        %1531 = vmatpush1.msra.mxu0 0.0
        %1532 = vmatprep.subr.mxu0 0.0
        %1533 = vmatpush1.msra.mxu0 0.0
        %1534 = vmatprep.subr.mxu0 0.0
        %1535 = vmatpush1.msra.mxu0 0.0
        %1536 = vmatprep.subr.mxu0 0.0
        %1537 = vmatpush1.msra.mxu0 0.0
        %1538 = vmatprep.subr.mxu0 0.0
        %1539 = vmatpush1.msra.mxu0 0.0
        %1540 = vmatprep.subr.mxu0 0.0
        %1541 = vmatpush1.msra.mxu0 0.0
        %1542 = vmatprep.subr.mxu0 0.0
        %1543 = vmatpush1.msra.mxu0 0.0
        %1544 = vmatprep.subr.mxu0 0.0
        %1545 = vmatpush1.msra.mxu0 0.0
        %1546 = vmatprep.subr.mxu0 0.0
        %1547 = vmatpush1.msra.mxu0 0.0
        %1548 = vmatprep.subr.mxu0 0.0
        %1549 = vmatpush1.msra.mxu0 0.0
        %1550 = vmatprep.subr.mxu0 0.0
        %1551 = vmatpush1.msra.mxu0 0.0
        %1552 = vmatprep.subr.mxu0 0.0
        %1553 = vmatpush1.msra.mxu0 0.0
        %1554 = vmatprep.subr.mxu0 0.0
        %1555 = vmatpush1.msra.mxu0 0.0
        %1556 = vmatprep.subr.mxu0 0.0
        %1557 = vmatpush1.msra.mxu0 0.0
        %1558 = vmatprep.subr.mxu0 0.0
        %1559 = vmatpush1.msra.mxu0 0.0
        %1560 = vmatprep.subr.mxu0 0.0
        %1561 = vmatpush1.msra.mxu0 0.0
        %1562 = vmatprep.subr.mxu0 0.0
        %1563 = vmatpush1.msra.mxu0 0.0
        %1564 = vmatprep.subr.mxu0 0.0
        %1565 = vmatpush1.msra.mxu0 0.0
        %1566 = vmatprep.subr.mxu0 0.0
        %1567 = vmatpush1.msra.mxu0 0.0
        %1568 = vmatprep.subr.mxu0 0.0
        %1569 = vmatpush1.msra.mxu0 0.0
        %1570 = vmatprep.subr.mxu0 0.0
        %1571 = vmatpush1.msra.mxu0 0.0
        %1572 = vmatprep.subr.mxu0 0.0
        %1573 = vmatpush1.msra.mxu0 0.0
        %1574 = vmatprep.subr.mxu0 0.0
        %1575 = vmatpush1.msra.mxu0 0.0
        %1576 = vmatprep.subr.mxu0 0.0
        %1577 = vmatpush1.msra.mxu0 0.0
        %1578 = vmatprep.subr.mxu0 0.0
        %1579 = vmatpush1.msra.mxu0 0.0
        %1580 = vmatprep.subr.mxu0 0.0
        %1581 = vmatpush1.msra.mxu0 0.0
        %1582 = vmatprep.subr.mxu0 0.0
        %1583 = vmatpush1.msra.mxu0 0.0
        %1584 = vmatprep.subr.mxu0 0.0
        %1585 = vmatpush1.msra.mxu0 0.0
        %1586 = vmatprep.mubr.f32.mxu0 0.0
        %1587 = vmatmul.mubr.f32.gmra.mrb[0].mxu0 %v1209
        %v1588 = vpop.f32.mrb[0].mxu0
        %v1589 = vadd.f32 0.0, %v1588
        %v1590 = vpop.f32.mrb[0].mxu0
        %1591 = vmatprep.mubr.f32.mxu0 0.0
        %1592 = vmatmul.mubr.f32.gmra.mrb[0].mxu0 %v1212
        %v1593 = vpop.f32.mrb[0].mxu0
        %v1594 = vadd.f32 0.0, %v1593
        %v1595 = vpop.f32.mrb[0].mxu0
        %1596 = vdwg.mxu0
        %v1597 = vmul.f32 %v1281, %v530
        %v1598 = vmul.f32 %v1283, %v542
        %v1599 = vmul.f32 %v1358, %v554
        %v1600 = vmul.f32 %v1360, %v566
        %v1601 = vmul.f32 %v1435, %v615
        %v1602 = vmul.f32 %v1437, %v597
        %v1603 = vmul.f32 %v1512, %v598
        %v1604 = vmul.f32 %v1514, %v599
        %v1605 = vmul.f32 %v1589, %v600
        %v1606 = vmul.f32 %v1287, %v531
        %v1607 = vmul.f32 %v1289, %v543
        %v1608 = vmul.f32 %v1364, %v555
        %v1609 = vmul.f32 %v1366, %v567
        %v1610 = vmul.f32 %v1441, %v616
        %v1611 = vmul.f32 %v1443, %v601
        %v1612 = vmul.f32 %v1518, %v602
        %v1613 = vmul.f32 %v1520, %v603
        %v1614 = vmul.f32 %v1594, %v604
        %v1615 = vld [vmem:[%s5] sm:$0xff]
        %v1616 = vld [vmem:[%s5 + $0x8] sm:$0xff]
        %v1617 = vld [vmem:[%s5 + $0x10] sm:$0xff]
        %v1618 = vld [vmem:[%s5 + $0x18] sm:$0xff]
        %v1619 = vld [vmem:[%s5 + $0x20] sm:$0xff]
        %v1620 = vld [vmem:[%s5 + $0x28] sm:$0xff]
        %v1621 = vld [vmem:[%s5 + $0x30] sm:$0xff]
        %v1622 = vld [vmem:[%s5 + $0x38] sm:$0xff]
        %v1623 = vld [vmem:[%s5 + $0x40] sm:$0xff]
        %v1624 = vld [vmem:[%s5 + $0x48] sm:$0xff]
        %v1625 = vld [vmem:[%s5 + $0x50] sm:$0xff]
        %v1626 = vld [vmem:[%s5 + $0x58] sm:$0xff]
        %v1627 = vld [vmem:[%s5 + $0x60] sm:$0xff]
        %v1628 = vld [vmem:[%s5 + $0x68] sm:$0xff]
        %v1629 = vld [vmem:[%s5 + $0x70] sm:$0xff]
        %v1630 = vld [vmem:[%s5 + $0x78] sm:$0xff]
        %v1631 = vld [vmem:[%s5 + $0x80] sm:$0xff]
        %v1632 = vld [vmem:[%s5 + $0x88] sm:$0xff]
        %v1633 = vld [vmem:[%s5 + $0x90] sm:$0xff]
        %v1634 = vld [vmem:[%s5 + $0x98] sm:$0xff]
        %v1635 = vld [vmem:[%s5 + $0xa0] sm:$0xff]
        %v1636 = vld [vmem:[%s5 + $0xa8] sm:$0xff]
        %v1637 = vld [vmem:[%s5 + $0xb0] sm:$0xff]
        %v1638 = vld [vmem:[%s5 + $0xb8] sm:$0xff]
        %v1639 = vld [vmem:[%s5 + $0xc0] sm:$0xff]
        %v1640 = vld [vmem:[%s5 + $0xc8] sm:$0xff]
        %v1641 = vld [vmem:[%s5 + $0xd0] sm:$0xff]
        %v1642 = vld [vmem:[%s5 + $0xd8] sm:$0xff]
        %v1643 = vld [vmem:[%s5 + $0xe0] sm:$0xff]
        %v1644 = vld [vmem:[%s5 + $0xe8] sm:$0xff]
        %v1645 = vld [vmem:[%s5 + $0xf0] sm:$0xff]
        %v1646 = vld [vmem:[%s5 + $0xf8] sm:$0xff]
        %v1647 = vld [vmem:[%s5 + $0x100] sm:$0xff]
        %v1648 = vld [vmem:[%s5 + $0x108] sm:$0xff]
        %v1649 = vld [vmem:[%s5 + $0x110] sm:$0xff]
        %v1650 = vld [vmem:[%s5 + $0x118] sm:$0xff]
        %v1651 = vld [vmem:[%s5 + $0x120] sm:$0xff]
        %v1652 = vld [vmem:[%s5 + $0x128] sm:$0xff]
        %v1653 = vld [vmem:[%s5 + $0x130] sm:$0xff]
        %v1654 = vld [vmem:[%s5 + $0x138] sm:$0xff]
        %v1655 = vld [vmem:[%s5 + $0x140] sm:$0xff]
        %v1656 = vld [vmem:[%s5 + $0x148] sm:$0xff]
        %v1657 = vld [vmem:[%s5 + $0x150] sm:$0xff]
        %v1658 = vld [vmem:[%s5 + $0x158] sm:$0xff]
        %v1659 = vld [vmem:[%s5 + $0x160] sm:$0xff]
        %v1660 = vld [vmem:[%s5 + $0x168] sm:$0xff]
        %v1661 = vld [vmem:[%s5 + $0x170] sm:$0xff]
        %v1662 = vld [vmem:[%s5 + $0x178] sm:$0xff]
        %v1663 = vld [vmem:[%s5 + $0x180] sm:$0xff]
        %v1664 = vld [vmem:[%s5 + $0x188] sm:$0xff]
        %v1665 = vld [vmem:[%s5 + $0x190] sm:$0xff]
        %v1666 = vld [vmem:[%s5 + $0x198] sm:$0xff]
        %v1667 = vld [vmem:[%s5 + $0x1a0] sm:$0xff]
        %v1668 = vld [vmem:[%s5 + $0x1a8] sm:$0xff]
        %v1669 = vld [vmem:[%s5 + $0x1b0] sm:$0xff]
        %v1670 = vld [vmem:[%s5 + $0x1b8] sm:$0xff]
        %v1671 = vld [vmem:[%s5 + $0x1c0] sm:$0xff]
        %v1672 = vld [vmem:[%s5 + $0x1c8] sm:$0xff]
        %v1673 = vld [vmem:[%s5 + $0x1d0] sm:$0xff]
        %v1674 = vld [vmem:[%s5 + $0x1d8] sm:$0xff]
        %v1675 = vld [vmem:[%s5 + $0x1e0] sm:$0xff]
        %v1676 = vld [vmem:[%s5 + $0x1e8] sm:$0xff]
        %v1677 = vld [vmem:[%s5 + $0x1f0] sm:$0xff]
        %v1678 = vld [vmem:[%s5 + $0x1f8] sm:$0xff]
        %v1679 = vld [vmem:[%s5 + $0x200] sm:$0xff]
        %v1680 = vld [vmem:[%s5 + $0x208] sm:$0xff]
        %v1681 = vld [vmem:[%s5 + $0x210] sm:$0xff]
        %v1682 = vld [vmem:[%s5 + $0x218] sm:$0xff]
        %v1683 = vld [vmem:[%s5 + $0x220] sm:$0xff]
        %v1684 = vld [vmem:[%s5 + $0x228] sm:$0xff]
        %v1685 = vld [vmem:[%s5 + $0x230] sm:$0xff]
        %v1686 = vld [vmem:[%s5 + $0x238] sm:$0xff]
        %v1687 = vld [vmem:[%s5 + $0x240] sm:$0xff]
        %v1688 = vld [vmem:[%s5 + $0x248] sm:$0xff]
        %v1689 = vld [vmem:[%s5 + $0x250] sm:$0xff]
        %v1690 = vld [vmem:[%s5 + $0x258] sm:$0xff]
        %v1691 = vld [vmem:[%s5 + $0x260] sm:$0xff]
        %v1692 = vld [vmem:[%s5 + $0x268] sm:$0xff]
        %v1693 = vld [vmem:[%s5 + $0x270] sm:$0xff]
        %v1694 = vld [vmem:[%s5 + $0x278] sm:$0xff]
        %v1695 = vld [vmem:[%s5 + $0x280] sm:$0xff]
        %v1696 = vld [vmem:[%s5 + $0x288] sm:$0xff]
        %v1697 = vld [vmem:[%s5 + $0x290] sm:$0xff]
        %v1698 = vld [vmem:[%s5 + $0x298] sm:$0xff]
        %v1699 = vld [vmem:[%s5 + $0x2a0] sm:$0xff]
        %v1700 = vld [vmem:[%s5 + $0x2a8] sm:$0xff]
        %v1701 = vld [vmem:[%s5 + $0x2b0] sm:$0xff]
        %v1702 = vld [vmem:[%s5 + $0x2b8] sm:$0xff]
        %v1703 = vld [vmem:[%s5 + $0x2c0] sm:$0xff]
        %v1704 = vld [vmem:[%s5 + $0x2c8] sm:$0xff]
        %v1705 = vld [vmem:[%s5 + $0x2d0] sm:$0xff]
        %v1706 = vld [vmem:[%s5 + $0x2d8] sm:$0xff]
        %v1707 = vld [vmem:[%s5 + $0x2e0] sm:$0xff]
        %v1708 = vld [vmem:[%s5 + $0x2e8] sm:$0xff]
        %v1709 = vld [vmem:[%s5 + $0x2f0] sm:$0xff]
        %v1710 = vld [vmem:[%s5 + $0x2f8] sm:$0xff]
        %v1711 = vld [vmem:[%s5 + $0x300] sm:$0xff]
        %v1712 = vld [vmem:[%s5 + $0x308] sm:$0xff]
        %v1713 = vld [vmem:[%s5 + $0x310] sm:$0xff]
        %v1714 = vld [vmem:[%s5 + $0x318] sm:$0xff]
        %v1715 = vld [vmem:[%s5 + $0x320] sm:$0xff]
        %v1716 = vld [vmem:[%s5 + $0x328] sm:$0xff]
        %v1717 = vld [vmem:[%s5 + $0x330] sm:$0xff]
        %v1718 = vld [vmem:[%s5 + $0x338] sm:$0xff]
        %v1719 = vld [vmem:[%s5 + $0x340] sm:$0xff]
        %v1720 = vld [vmem:[%s5 + $0x348] sm:$0xff]
        %v1721 = vld [vmem:[%s5 + $0x350] sm:$0xff]
        %v1722 = vld [vmem:[%s5 + $0x358] sm:$0xff]
        %v1723 = vld [vmem:[%s5 + $0x360] sm:$0xff]
        %v1724 = vld [vmem:[%s5 + $0x368] sm:$0xff]
        %v1725 = vld [vmem:[%s5 + $0x370] sm:$0xff]
        %v1726 = vld [vmem:[%s5 + $0x378] sm:$0xff]
        %v1727 = vld [vmem:[%s5 + $0x380] sm:$0xff]
        %v1728 = vld [vmem:[%s5 + $0x388] sm:$0xff]
        %v1729 = vld [vmem:[%s5 + $0x390] sm:$0xff]
        %v1730 = vld [vmem:[%s5 + $0x398] sm:$0xff]
        %v1731 = vld [vmem:[%s5 + $0x3a0] sm:$0xff]
        %v1732 = vld [vmem:[%s5 + $0x3a8] sm:$0xff]
        %v1733 = vld [vmem:[%s5 + $0x3b0] sm:$0xff]
        %v1734 = vld [vmem:[%s5 + $0x3b8] sm:$0xff]
        %v1735 = vld [vmem:[%s5 + $0x3c0] sm:$0xff]
        %v1736 = vld [vmem:[%s5 + $0x3c8] sm:$0xff]
        %v1737 = vld [vmem:[%s5 + $0x3d0] sm:$0xff]
        %v1738 = vld [vmem:[%s5 + $0x3d8] sm:$0xff]
        %v1739 = vld [vmem:[%s5 + $0x3e0] sm:$0xff]
        %v1740 = vld [vmem:[%s5 + $0x3e8] sm:$0xff]
        %v1741 = vld [vmem:[%s5 + $0x3f0] sm:$0xff]
        %v1742 = vld [vmem:[%s5 + $0x3f8] sm:$0xff]
        %v1743 = vld [vmem:[%s5 + $0x400] sm:$0xff]
        %v1744 = vld [vmem:[%s5 + $0x408] sm:$0xff]
        %v1745 = vld [vmem:[%s5 + $0x410] sm:$0xff]
        %v1746 = vld [vmem:[%s5 + $0x418] sm:$0xff]
        %1749 = vrot.lane.b32.xlu0 %v424, 96
        %v1750 = vpop.permute.xlu0 %1749
        %1751 = vrot.lane.b32.xlu0 %v430, 96
        %v1752 = vpop.permute.xlu0 %1751
        %v1756 = vsel %vm1207, %v1605, 0
        %v1759 = vsel %vm1207, %v1614, 0
        %1761 = vmatprep.subr.mxu0 0.0
        %1762 = vmatpush1.msra.mxu0 %v1615
        %1763 = vmatprep.subr.mxu0 0.0
        %1764 = vmatpush1.msra.mxu0 %v1616
        %1765 = vmatprep.subr.mxu0 0.0
        %1766 = vmatpush1.msra.mxu0 %v1617
        %1767 = vmatprep.subr.mxu0 0.0
        %1768 = vmatpush1.msra.mxu0 %v1618
        %1769 = vmatprep.subr.mxu0 0.0
        %1770 = vmatpush1.msra.mxu0 %v1619
        %1771 = vmatprep.subr.mxu0 0.0
        %1772 = vmatpush1.msra.mxu0 %v1620
        %1773 = vmatprep.subr.mxu0 0.0
        %1774 = vmatpush1.msra.mxu0 %v1621
        %1775 = vmatprep.subr.mxu0 0.0
        %1776 = vmatpush1.msra.mxu0 %v1622
        %1777 = vmatprep.subr.mxu0 0.0
        %1778 = vmatpush1.msra.mxu0 %v1623
        %1779 = vmatprep.subr.mxu0 0.0
        %1780 = vmatpush1.msra.mxu0 %v1624
        %1781 = vmatprep.subr.mxu0 0.0
        %1782 = vmatpush1.msra.mxu0 %v1625
        %1783 = vmatprep.subr.mxu0 0.0
        %1784 = vmatpush1.msra.mxu0 %v1626
        %1785 = vmatprep.subr.mxu0 0.0
        %1786 = vmatpush1.msra.mxu0 %v1627
        %1787 = vmatprep.subr.mxu0 0.0
        %1788 = vmatpush1.msra.mxu0 %v1628
        %1789 = vmatprep.subr.mxu0 0.0
        %1790 = vmatpush1.msra.mxu0 %v1629
        %1791 = vmatprep.subr.mxu0 0.0
        %1792 = vmatpush1.msra.mxu0 %v1630
        %1793 = vmatprep.subr.mxu0 0.0
        %1794 = vmatpush1.msra.mxu0 %v1631
        %1795 = vmatprep.subr.mxu0 0.0
        %1796 = vmatpush1.msra.mxu0 %v1632
        %1797 = vmatprep.subr.mxu0 0.0
        %1798 = vmatpush1.msra.mxu0 %v1633
        %1799 = vmatprep.subr.mxu0 0.0
        %1800 = vmatpush1.msra.mxu0 %v1634
        %1801 = vmatprep.subr.mxu0 0.0
        %1802 = vmatpush1.msra.mxu0 %v1635
        %1803 = vmatprep.subr.mxu0 0.0
        %1804 = vmatpush1.msra.mxu0 %v1636
        %1805 = vmatprep.subr.mxu0 0.0
        %1806 = vmatpush1.msra.mxu0 %v1637
        %1807 = vmatprep.subr.mxu0 0.0
        %1808 = vmatpush1.msra.mxu0 %v1638
        %1809 = vmatprep.subr.mxu0 0.0
        %1810 = vmatpush1.msra.mxu0 %v1639
        %1811 = vmatprep.subr.mxu0 0.0
        %1812 = vmatpush1.msra.mxu0 %v1640
        %1813 = vmatprep.subr.mxu0 0.0
        %1814 = vmatpush1.msra.mxu0 %v1641
        %1815 = vmatprep.subr.mxu0 0.0
        %1816 = vmatpush1.msra.mxu0 %v1642
        %1817 = vmatprep.subr.mxu0 0.0
        %1818 = vmatpush1.msra.mxu0 %v1643
        %1819 = vmatprep.subr.mxu0 0.0
        %1820 = vmatpush1.msra.mxu0 %v1644
        %1821 = vmatprep.subr.mxu0 0.0
        %1822 = vmatpush1.msra.mxu0 %v1645
        %1823 = vmatprep.subr.mxu0 0.0
        %1824 = vmatpush1.msra.mxu0 %v1646
        %1825 = vmatprep.mubr.f32.mxu0 %v1598
        %1826 = vmatmul.mubr.f32.gmra.mrb[0].mxu0 %v1597
        %v1827 = vpop.f32.mrb[0].mxu0
        %v1828 = vadd.f32 %v1750, %v1827
        %v1829 = vpop.f32.mrb[0].mxu0
        %1830 = vmatprep.mubr.f32.mxu0 %v1607
        %1831 = vmatmul.mubr.f32.gmra.mrb[0].mxu0 %v1606
        %v1832 = vpop.f32.mrb[0].mxu0
        %v1833 = vadd.f32 %v1752, %v1832
        %v1834 = vpop.f32.mrb[0].mxu0
        %1835 = vdwg.mxu0
        %1836 = vmatprep.subr.mxu0 0.0
        %1837 = vmatpush1.msra.mxu0 %v1647
        %1838 = vmatprep.subr.mxu0 0.0
        %1839 = vmatpush1.msra.mxu0 %v1648
        %1840 = vmatprep.subr.mxu0 0.0
        %1841 = vmatpush1.msra.mxu0 %v1649
        %1842 = vmatprep.subr.mxu0 0.0
        %1843 = vmatpush1.msra.mxu0 %v1650
        %1844 = vmatprep.subr.mxu0 0.0
        %1845 = vmatpush1.msra.mxu0 %v1651
        %1846 = vmatprep.subr.mxu0 0.0
        %1847 = vmatpush1.msra.mxu0 %v1652
        %1848 = vmatprep.subr.mxu0 0.0
        %1849 = vmatpush1.msra.mxu0 %v1653
        %1850 = vmatprep.subr.mxu0 0.0
        %1851 = vmatpush1.msra.mxu0 %v1654
        %1852 = vmatprep.subr.mxu0 0.0
        %1853 = vmatpush1.msra.mxu0 %v1655
        %1854 = vmatprep.subr.mxu0 0.0
        %1855 = vmatpush1.msra.mxu0 %v1656
        %1856 = vmatprep.subr.mxu0 0.0
        %1857 = vmatpush1.msra.mxu0 %v1657
        %1858 = vmatprep.subr.mxu0 0.0
        %1859 = vmatpush1.msra.mxu0 %v1658
        %1860 = vmatprep.subr.mxu0 0.0
        %1861 = vmatpush1.msra.mxu0 %v1659
        %1862 = vmatprep.subr.mxu0 0.0
        %1863 = vmatpush1.msra.mxu0 %v1660
        %1864 = vmatprep.subr.mxu0 0.0
        %1865 = vmatpush1.msra.mxu0 %v1661
        %1866 = vmatprep.subr.mxu0 0.0
        %1867 = vmatpush1.msra.mxu0 %v1662
        %1868 = vmatprep.subr.mxu0 0.0
        %1869 = vmatpush1.msra.mxu0 %v1663
        %1870 = vmatprep.subr.mxu0 0.0
        %1871 = vmatpush1.msra.mxu0 %v1664
        %1872 = vmatprep.subr.mxu0 0.0
        %1873 = vmatpush1.msra.mxu0 %v1665
        %1874 = vmatprep.subr.mxu0 0.0
        %1875 = vmatpush1.msra.mxu0 %v1666
        %1876 = vmatprep.subr.mxu0 0.0
        %1877 = vmatpush1.msra.mxu0 %v1667
        %1878 = vmatprep.subr.mxu0 0.0
        %1879 = vmatpush1.msra.mxu0 %v1668
        %1880 = vmatprep.subr.mxu0 0.0
        %1881 = vmatpush1.msra.mxu0 %v1669
        %1882 = vmatprep.subr.mxu0 0.0
        %1883 = vmatpush1.msra.mxu0 %v1670
        %1884 = vmatprep.subr.mxu0 0.0
        %1885 = vmatpush1.msra.mxu0 %v1671
        %1886 = vmatprep.subr.mxu0 0.0
        %1887 = vmatpush1.msra.mxu0 %v1672
        %1888 = vmatprep.subr.mxu0 0.0
        %1889 = vmatpush1.msra.mxu0 %v1673
        %1890 = vmatprep.subr.mxu0 0.0
        %1891 = vmatpush1.msra.mxu0 %v1674
        %1892 = vmatprep.subr.mxu0 0.0
        %1893 = vmatpush1.msra.mxu0 %v1675
        %1894 = vmatprep.subr.mxu0 0.0
        %1895 = vmatpush1.msra.mxu0 %v1676
        %1896 = vmatprep.subr.mxu0 0.0
        %1897 = vmatpush1.msra.mxu0 %v1677
        %1898 = vmatprep.subr.mxu0 0.0
        %1899 = vmatpush1.msra.mxu0 %v1678
        %1900 = vmatprep.mubr.f32.mxu0 %v1600
        %1901 = vmatmul.mubr.f32.gmra.mrb[0].mxu0 %v1599
        %v1902 = vpop.f32.mrb[0].mxu0
        %v1903 = vadd.f32 %v1828, %v1902
        %v1904 = vpop.f32.mrb[0].mxu0
        %1905 = vmatprep.mubr.f32.mxu0 %v1609
        %1906 = vmatmul.mubr.f32.gmra.mrb[0].mxu0 %v1608
        %v1907 = vpop.f32.mrb[0].mxu0
        %v1908 = vadd.f32 %v1833, %v1907
        %v1909 = vpop.f32.mrb[0].mxu0
        %1910 = vdwg.mxu0
        %1911 = vmatprep.subr.mxu0 0.0
        %1912 = vmatpush1.msra.mxu0 %v1679
        %1913 = vmatprep.subr.mxu0 0.0
        %1914 = vmatpush1.msra.mxu0 %v1680
        %1915 = vmatprep.subr.mxu0 0.0
        %1916 = vmatpush1.msra.mxu0 %v1681
        %1917 = vmatprep.subr.mxu0 0.0
        %1918 = vmatpush1.msra.mxu0 %v1682
        %1919 = vmatprep.subr.mxu0 0.0
        %1920 = vmatpush1.msra.mxu0 %v1683
        %1921 = vmatprep.subr.mxu0 0.0
        %1922 = vmatpush1.msra.mxu0 %v1684
        %1923 = vmatprep.subr.mxu0 0.0
        %1924 = vmatpush1.msra.mxu0 %v1685
        %1925 = vmatprep.subr.mxu0 0.0
        %1926 = vmatpush1.msra.mxu0 %v1686
        %1927 = vmatprep.subr.mxu0 0.0
        %1928 = vmatpush1.msra.mxu0 %v1687
        %1929 = vmatprep.subr.mxu0 0.0
        %1930 = vmatpush1.msra.mxu0 %v1688
        %1931 = vmatprep.subr.mxu0 0.0
        %1932 = vmatpush1.msra.mxu0 %v1689
        %1933 = vmatprep.subr.mxu0 0.0
        %1934 = vmatpush1.msra.mxu0 %v1690
        %1935 = vmatprep.subr.mxu0 0.0
        %1936 = vmatpush1.msra.mxu0 %v1691
        %1937 = vmatprep.subr.mxu0 0.0
        %1938 = vmatpush1.msra.mxu0 %v1692
        %1939 = vmatprep.subr.mxu0 0.0
        %1940 = vmatpush1.msra.mxu0 %v1693
        %1941 = vmatprep.subr.mxu0 0.0
        %1942 = vmatpush1.msra.mxu0 %v1694
        %1943 = vmatprep.subr.mxu0 0.0
        %1944 = vmatpush1.msra.mxu0 %v1695
        %1945 = vmatprep.subr.mxu0 0.0
        %1946 = vmatpush1.msra.mxu0 %v1696
        %1947 = vmatprep.subr.mxu0 0.0
        %1948 = vmatpush1.msra.mxu0 %v1697
        %1949 = vmatprep.subr.mxu0 0.0
        %1950 = vmatpush1.msra.mxu0 %v1698
        %1951 = vmatprep.subr.mxu0 0.0
        %1952 = vmatpush1.msra.mxu0 %v1699
        %1953 = vmatprep.subr.mxu0 0.0
        %1954 = vmatpush1.msra.mxu0 %v1700
        %1955 = vmatprep.subr.mxu0 0.0
        %1956 = vmatpush1.msra.mxu0 %v1701
        %1957 = vmatprep.subr.mxu0 0.0
        %1958 = vmatpush1.msra.mxu0 %v1702
        %1959 = vmatprep.subr.mxu0 0.0
        %1960 = vmatpush1.msra.mxu0 %v1703
        %1961 = vmatprep.subr.mxu0 0.0
        %1962 = vmatpush1.msra.mxu0 %v1704
        %1963 = vmatprep.subr.mxu0 0.0
        %1964 = vmatpush1.msra.mxu0 %v1705
        %1965 = vmatprep.subr.mxu0 0.0
        %1966 = vmatpush1.msra.mxu0 %v1706
        %1967 = vmatprep.subr.mxu0 0.0
        %1968 = vmatpush1.msra.mxu0 %v1707
        %1969 = vmatprep.subr.mxu0 0.0
        %1970 = vmatpush1.msra.mxu0 %v1708
        %1971 = vmatprep.subr.mxu0 0.0
        %1972 = vmatpush1.msra.mxu0 %v1709
        %1973 = vmatprep.subr.mxu0 0.0
        %1974 = vmatpush1.msra.mxu0 %v1710
        %1975 = vmatprep.mubr.f32.mxu0 %v1602
        %1976 = vmatmul.mubr.f32.gmra.mrb[0].mxu0 %v1601
        %v1977 = vpop.f32.mrb[0].mxu0
        %v1978 = vadd.f32 %v1903, %v1977
        %v1979 = vpop.f32.mrb[0].mxu0
        %1980 = vmatprep.mubr.f32.mxu0 %v1611
        %1981 = vmatmul.mubr.f32.gmra.mrb[0].mxu0 %v1610
        %v1982 = vpop.f32.mrb[0].mxu0
        %v1983 = vadd.f32 %v1908, %v1982
        %v1984 = vpop.f32.mrb[0].mxu0
        %1985 = vdwg.mxu0
        %1986 = vmatprep.subr.mxu0 0.0
        %1987 = vmatpush1.msra.mxu0 %v1711
        %1988 = vmatprep.subr.mxu0 0.0
        %1989 = vmatpush1.msra.mxu0 %v1712
        %1990 = vmatprep.subr.mxu0 0.0
        %1991 = vmatpush1.msra.mxu0 %v1713
        %1992 = vmatprep.subr.mxu0 0.0
        %1993 = vmatpush1.msra.mxu0 %v1714
        %1994 = vmatprep.subr.mxu0 0.0
        %1995 = vmatpush1.msra.mxu0 %v1715
        %1996 = vmatprep.subr.mxu0 0.0
        %1997 = vmatpush1.msra.mxu0 %v1716
        %1998 = vmatprep.subr.mxu0 0.0
        %1999 = vmatpush1.msra.mxu0 %v1717
        %2000 = vmatprep.subr.mxu0 0.0
        %2001 = vmatpush1.msra.mxu0 %v1718
        %2002 = vmatprep.subr.mxu0 0.0
        %2003 = vmatpush1.msra.mxu0 %v1719
        %2004 = vmatprep.subr.mxu0 0.0
        %2005 = vmatpush1.msra.mxu0 %v1720
        %2006 = vmatprep.subr.mxu0 0.0
        %2007 = vmatpush1.msra.mxu0 %v1721
        %2008 = vmatprep.subr.mxu0 0.0
        %2009 = vmatpush1.msra.mxu0 %v1722
        %2010 = vmatprep.subr.mxu0 0.0
        %2011 = vmatpush1.msra.mxu0 %v1723
        %2012 = vmatprep.subr.mxu0 0.0
        %2013 = vmatpush1.msra.mxu0 %v1724
        %2014 = vmatprep.subr.mxu0 0.0
        %2015 = vmatpush1.msra.mxu0 %v1725
        %2016 = vmatprep.subr.mxu0 0.0
        %2017 = vmatpush1.msra.mxu0 %v1726
        %2018 = vmatprep.subr.mxu0 0.0
        %2019 = vmatpush1.msra.mxu0 %v1727
        %2020 = vmatprep.subr.mxu0 0.0
        %2021 = vmatpush1.msra.mxu0 %v1728
        %2022 = vmatprep.subr.mxu0 0.0
        %2023 = vmatpush1.msra.mxu0 %v1729
        %2024 = vmatprep.subr.mxu0 0.0
        %2025 = vmatpush1.msra.mxu0 %v1730
        %2026 = vmatprep.subr.mxu0 0.0
        %2027 = vmatpush1.msra.mxu0 %v1731
        %2028 = vmatprep.subr.mxu0 0.0
        %2029 = vmatpush1.msra.mxu0 %v1732
        %2030 = vmatprep.subr.mxu0 0.0
        %2031 = vmatpush1.msra.mxu0 %v1733
        %2032 = vmatprep.subr.mxu0 0.0
        %2033 = vmatpush1.msra.mxu0 %v1734
        %2034 = vmatprep.subr.mxu0 0.0
        %2035 = vmatpush1.msra.mxu0 %v1735
        %2036 = vmatprep.subr.mxu0 0.0
        %2037 = vmatpush1.msra.mxu0 %v1736
        %2038 = vmatprep.subr.mxu0 0.0
        %2039 = vmatpush1.msra.mxu0 %v1737
        %2040 = vmatprep.subr.mxu0 0.0
        %2041 = vmatpush1.msra.mxu0 %v1738
        %2042 = vmatprep.subr.mxu0 0.0
        %2043 = vmatpush1.msra.mxu0 %v1739
        %2044 = vmatprep.subr.mxu0 0.0
        %2045 = vmatpush1.msra.mxu0 %v1740
        %2046 = vmatprep.subr.mxu0 0.0
        %2047 = vmatpush1.msra.mxu0 %v1741
        %2048 = vmatprep.subr.mxu0 0.0
        %2049 = vmatpush1.msra.mxu0 %v1742
        %2050 = vmatprep.mubr.f32.mxu0 %v1604
        %2051 = vmatmul.mubr.f32.gmra.mrb[0].mxu0 %v1603
        %v2052 = vpop.f32.mrb[0].mxu0
        %v2053 = vadd.f32 %v1978, %v2052
        %v2054 = vpop.f32.mrb[0].mxu0
        %2055 = vmatprep.mubr.f32.mxu0 %v1613
        %2056 = vmatmul.mubr.f32.gmra.mrb[0].mxu0 %v1612
        %v2057 = vpop.f32.mrb[0].mxu0
        %v2058 = vadd.f32 %v1983, %v2057
        %v2059 = vpop.f32.mrb[0].mxu0
        %2060 = vdwg.mxu0
        %2061 = vmatprep.subr.mxu0 0.0
        %2062 = vmatpush1.msra.mxu0 %v1743
        %2063 = vmatprep.subr.mxu0 0.0
        %2064 = vmatpush1.msra.mxu0 %v1744
        %2065 = vmatprep.subr.mxu0 0.0
        %2066 = vmatpush1.msra.mxu0 %v1745
        %2067 = vmatprep.subr.mxu0 0.0
        %2068 = vmatpush1.msra.mxu0 %v1746
        %2069 = vmatprep.subr.mxu0 0.0
        %2070 = vmatpush1.msra.mxu0 0.0
        %2071 = vmatprep.subr.mxu0 0.0
        %2072 = vmatpush1.msra.mxu0 0.0
        %2073 = vmatprep.subr.mxu0 0.0
        %2074 = vmatpush1.msra.mxu0 0.0
        %2075 = vmatprep.subr.mxu0 0.0
        %2076 = vmatpush1.msra.mxu0 0.0
        %2077 = vmatprep.subr.mxu0 0.0
        %2078 = vmatpush1.msra.mxu0 0.0
        %2079 = vmatprep.subr.mxu0 0.0
        %2080 = vmatpush1.msra.mxu0 0.0
        %2081 = vmatprep.subr.mxu0 0.0
        %2082 = vmatpush1.msra.mxu0 0.0
        %2083 = vmatprep.subr.mxu0 0.0
        %2084 = vmatpush1.msra.mxu0 0.0
        %2085 = vmatprep.subr.mxu0 0.0
        %2086 = vmatpush1.msra.mxu0 0.0
        %2087 = vmatprep.subr.mxu0 0.0
        %2088 = vmatpush1.msra.mxu0 0.0
        %2089 = vmatprep.subr.mxu0 0.0
        %2090 = vmatpush1.msra.mxu0 0.0
        %2091 = vmatprep.subr.mxu0 0.0
        %2092 = vmatpush1.msra.mxu0 0.0
        %2093 = vmatprep.subr.mxu0 0.0
        %2094 = vmatpush1.msra.mxu0 0.0
        %2095 = vmatprep.subr.mxu0 0.0
        %2096 = vmatpush1.msra.mxu0 0.0
        %2097 = vmatprep.subr.mxu0 0.0
        %2098 = vmatpush1.msra.mxu0 0.0
        %2099 = vmatprep.subr.mxu0 0.0
        %2100 = vmatpush1.msra.mxu0 0.0
        %2101 = vmatprep.subr.mxu0 0.0
        %2102 = vmatpush1.msra.mxu0 0.0
        %2103 = vmatprep.subr.mxu0 0.0
        %2104 = vmatpush1.msra.mxu0 0.0
        %2105 = vmatprep.subr.mxu0 0.0
        %2106 = vmatpush1.msra.mxu0 0.0
        %2107 = vmatprep.subr.mxu0 0.0
        %2108 = vmatpush1.msra.mxu0 0.0
        %2109 = vmatprep.subr.mxu0 0.0
        %2110 = vmatpush1.msra.mxu0 0.0
        %2111 = vmatprep.subr.mxu0 0.0
        %2112 = vmatpush1.msra.mxu0 0.0
        %2113 = vmatprep.subr.mxu0 0.0
        %2114 = vmatpush1.msra.mxu0 0.0
        %2115 = vmatprep.subr.mxu0 0.0
        %2116 = vmatpush1.msra.mxu0 0.0
        %2117 = vmatprep.subr.mxu0 0.0
        %2118 = vmatpush1.msra.mxu0 0.0
        %2119 = vmatprep.subr.mxu0 0.0
        %2120 = vmatpush1.msra.mxu0 0.0
        %2121 = vmatprep.subr.mxu0 0.0
        %2122 = vmatpush1.msra.mxu0 0.0
        %2123 = vmatprep.subr.mxu0 0.0
        %2124 = vmatpush1.msra.mxu0 0.0
        %2125 = vmatprep.mubr.f32.mxu0 0.0
        %2126 = vmatmul.mubr.f32.gmra.mrb[0].mxu0 %v1756
        %v2127 = vpop.f32.mrb[0].mxu0
        %v2128 = vadd.f32 %v2053, %v2127
        %v2129 = vpop.f32.mrb[0].mxu0
        %2130 = vmatprep.mubr.f32.mxu0 0.0
        %2131 = vmatmul.mubr.f32.gmra.mrb[0].mxu0 %v1759
        %v2132 = vpop.f32.mrb[0].mxu0
        %v2133 = vadd.f32 %v2058, %v2132
        %v2134 = vpop.f32.mrb[0].mxu0
        %2135 = vdwg.mxu0
        %v2136 = vmax.f32 %v2128, 0.0
        %v2137 = vmax.f32 %v2133, 0.0
        %v2139 = vsel %vm596, %v2136, 0
        %v2142 = vsel %vm596, %v2137, 0
        %2144 = vmatprep.subr.mxu0 %v618
        %2145 = vmatpush1.msra.mxu0 %v617
        %2146 = vmatprep.subr.mxu0 %v623
        %2147 = vmatpush1.msra.mxu0 %v622
        %2148 = vmatprep.subr.mxu0 0.0
        %2149 = vmatpush1.msra.mxu0 0.0
        %2150 = vmatprep.subr.mxu0 0.0
        %2151 = vmatpush1.msra.mxu0 0.0
        %2152 = vmatprep.subr.mxu0 0.0
        %2153 = vmatpush1.msra.mxu0 0.0
        %2154 = vmatprep.subr.mxu0 0.0
        %2155 = vmatpush1.msra.mxu0 0.0
        %2156 = vmatprep.subr.mxu0 0.0
        %2157 = vmatpush1.msra.mxu0 0.0
        %2158 = vmatprep.subr.mxu0 0.0
        %2159 = vmatpush1.msra.mxu0 0.0
        %2160 = vmatprep.subr.mxu0 0.0
        %2161 = vmatpush1.msra.mxu0 0.0
        %2162 = vmatprep.subr.mxu0 0.0
        %2163 = vmatpush1.msra.mxu0 0.0
        %2164 = vmatprep.subr.mxu0 0.0
        %2165 = vmatpush1.msra.mxu0 0.0
        %2166 = vmatprep.subr.mxu0 0.0
        %2167 = vmatpush1.msra.mxu0 0.0
        %2168 = vmatprep.subr.mxu0 0.0
        %2169 = vmatpush1.msra.mxu0 0.0
        %2170 = vmatprep.subr.mxu0 0.0
        %2171 = vmatpush1.msra.mxu0 0.0
        %2172 = vmatprep.subr.mxu0 0.0
        %2173 = vmatpush1.msra.mxu0 0.0
        %2174 = vmatprep.subr.mxu0 0.0
        %2175 = vmatpush1.msra.mxu0 0.0
        %2176 = vmatprep.subr.mxu0 0.0
        %2177 = vmatpush1.msra.mxu0 0.0
        %2178 = vmatprep.subr.mxu0 0.0
        %2179 = vmatpush1.msra.mxu0 0.0
        %2180 = vmatprep.subr.mxu0 0.0
        %2181 = vmatpush1.msra.mxu0 0.0
        %2182 = vmatprep.subr.mxu0 0.0
        %2183 = vmatpush1.msra.mxu0 0.0
        %2184 = vmatprep.subr.mxu0 0.0
        %2185 = vmatpush1.msra.mxu0 0.0
        %2186 = vmatprep.subr.mxu0 0.0
        %2187 = vmatpush1.msra.mxu0 0.0
        %2188 = vmatprep.subr.mxu0 0.0
        %2189 = vmatpush1.msra.mxu0 0.0
        %2190 = vmatprep.subr.mxu0 0.0
        %2191 = vmatpush1.msra.mxu0 0.0
        %2192 = vmatprep.subr.mxu0 0.0
        %2193 = vmatpush1.msra.mxu0 0.0
        %2194 = vmatprep.subr.mxu0 0.0
        %2195 = vmatpush1.msra.mxu0 0.0
        %2196 = vmatprep.subr.mxu0 0.0
        %2197 = vmatpush1.msra.mxu0 0.0
        %2198 = vmatprep.subr.mxu0 0.0
        %2199 = vmatpush1.msra.mxu0 0.0
        %2200 = vmatprep.subr.mxu0 0.0
        %2201 = vmatpush1.msra.mxu0 0.0
        %2202 = vmatprep.subr.mxu0 0.0
        %2203 = vmatpush1.msra.mxu0 0.0
        %2204 = vmatprep.subr.mxu0 0.0
        %2205 = vmatpush1.msra.mxu0 0.0
        %2206 = vmatprep.subr.mxu0 0.0
        %2207 = vmatpush1.msra.mxu0 0.0
        %2208 = vmatprep.mubr.f32.mxu0 0.0
        %2209 = vmatmul.mubr.f32.gmra.mrb[0].mxu0 %v2139
        %v2210 = vpop.f32.mrb[0].mxu0
        %v2211 = vadd.f32 0.0, %v2210
        %v2212 = vpop.f32.mrb[0].mxu0
        %v2213 = vadd.f32 0.0, %v2212
        %2214 = vmatprep.mubr.f32.mxu0 0.0
        %2215 = vmatmul.mubr.f32.gmra.mrb[0].mxu0 %v2142
        %v2216 = vpop.f32.mrb[0].mxu0
        %v2217 = vadd.f32 0.0, %v2216
        %v2218 = vpop.f32.mrb[0].mxu0
        %v2219 = vadd.f32 0.0, %v2218
        %2220 = vdwg.mxu0
        %2221 = vmatprep.subr.mxu0 %v620
        %2222 = vmatpush1.msra.mxu0 %v619
        %2223 = vmatprep.subr.mxu0 %v625
        %2224 = vmatpush1.msra.mxu0 %v624
        %2225 = vmatprep.subr.mxu0 0.0
        %2226 = vmatpush1.msra.mxu0 0.0
        %2227 = vmatprep.subr.mxu0 0.0
        %2228 = vmatpush1.msra.mxu0 0.0
        %2229 = vmatprep.subr.mxu0 0.0
        %2230 = vmatpush1.msra.mxu0 0.0
        %2231 = vmatprep.subr.mxu0 0.0
        %2232 = vmatpush1.msra.mxu0 0.0
        %2233 = vmatprep.subr.mxu0 0.0
        %2234 = vmatpush1.msra.mxu0 0.0
        %2235 = vmatprep.subr.mxu0 0.0
        %2236 = vmatpush1.msra.mxu0 0.0
        %2237 = vmatprep.subr.mxu0 0.0
        %2238 = vmatpush1.msra.mxu0 0.0
        %2239 = vmatprep.subr.mxu0 0.0
        %2240 = vmatpush1.msra.mxu0 0.0
        %2241 = vmatprep.subr.mxu0 0.0
        %2242 = vmatpush1.msra.mxu0 0.0
        %2243 = vmatprep.subr.mxu0 0.0
        %2244 = vmatpush1.msra.mxu0 0.0
        %2245 = vmatprep.subr.mxu0 0.0
        %2246 = vmatpush1.msra.mxu0 0.0
        %2247 = vmatprep.subr.mxu0 0.0
        %2248 = vmatpush1.msra.mxu0 0.0
        %2249 = vmatprep.subr.mxu0 0.0
        %2250 = vmatpush1.msra.mxu0 0.0
        %2251 = vmatprep.subr.mxu0 0.0
        %2252 = vmatpush1.msra.mxu0 0.0
        %2253 = vmatprep.subr.mxu0 0.0
        %2254 = vmatpush1.msra.mxu0 0.0
        %2255 = vmatprep.subr.mxu0 0.0
        %2256 = vmatpush1.msra.mxu0 0.0
        %2257 = vmatprep.subr.mxu0 0.0
        %2258 = vmatpush1.msra.mxu0 0.0
        %2259 = vmatprep.subr.mxu0 0.0
        %2260 = vmatpush1.msra.mxu0 0.0
        %2261 = vmatprep.subr.mxu0 0.0
        %2262 = vmatpush1.msra.mxu0 0.0
        %2263 = vmatprep.subr.mxu0 0.0
        %2264 = vmatpush1.msra.mxu0 0.0
        %2265 = vmatprep.subr.mxu0 0.0
        %2266 = vmatpush1.msra.mxu0 0.0
        %2267 = vmatprep.subr.mxu0 0.0
        %2268 = vmatpush1.msra.mxu0 0.0
        %2269 = vmatprep.subr.mxu0 0.0
        %2270 = vmatpush1.msra.mxu0 0.0
        %2271 = vmatprep.subr.mxu0 0.0
        %2272 = vmatpush1.msra.mxu0 0.0
        %2273 = vmatprep.subr.mxu0 0.0
        %2274 = vmatpush1.msra.mxu0 0.0
        %2275 = vmatprep.subr.mxu0 0.0
        %2276 = vmatpush1.msra.mxu0 0.0
        %2277 = vmatprep.subr.mxu0 0.0
        %2278 = vmatpush1.msra.mxu0 0.0
        %2279 = vmatprep.subr.mxu0 0.0
        %2280 = vmatpush1.msra.mxu0 0.0
        %2281 = vmatprep.subr.mxu0 0.0
        %2282 = vmatpush1.msra.mxu0 0.0
        %2283 = vmatprep.subr.mxu0 0.0
        %2284 = vmatpush1.msra.mxu0 0.0
        %2285 = vmatprep.mubr.f32.mxu0 0.0
        %2286 = vmatmul.mubr.f32.gmra.mrb[0].mxu0 %v2139
        %v2287 = vpop.f32.mrb[0].mxu0
        %v2288 = vadd.f32 0.0, %v2287
        %v2289 = vpop.f32.mrb[0].mxu0
        %v2290 = vadd.f32 0.0, %v2289
        %2291 = vmatprep.mubr.f32.mxu0 0.0
        %2292 = vmatmul.mubr.f32.gmra.mrb[0].mxu0 %v2142
        %v2293 = vpop.f32.mrb[0].mxu0
        %v2294 = vadd.f32 0.0, %v2293
        %v2295 = vpop.f32.mrb[0].mxu0
        %v2296 = vadd.f32 0.0, %v2295
        %2297 = vdwg.mxu0
        %2298 = vmatprep.subr.mxu0 0.0
        %2299 = vmatpush1.msra.mxu0 %v621
        %2300 = vmatprep.subr.mxu0 0.0
        %2301 = vmatpush1.msra.mxu0 %v626
        %2302 = vmatprep.subr.mxu0 0.0
        %2303 = vmatpush1.msra.mxu0 0.0
        %2304 = vmatprep.subr.mxu0 0.0
        %2305 = vmatpush1.msra.mxu0 0.0
        %2306 = vmatprep.subr.mxu0 0.0
        %2307 = vmatpush1.msra.mxu0 0.0
        %2308 = vmatprep.subr.mxu0 0.0
        %2309 = vmatpush1.msra.mxu0 0.0
        %2310 = vmatprep.subr.mxu0 0.0
        %2311 = vmatpush1.msra.mxu0 0.0
        %2312 = vmatprep.subr.mxu0 0.0
        %2313 = vmatpush1.msra.mxu0 0.0
        %2314 = vmatprep.subr.mxu0 0.0
        %2315 = vmatpush1.msra.mxu0 0.0
        %2316 = vmatprep.subr.mxu0 0.0
        %2317 = vmatpush1.msra.mxu0 0.0
        %2318 = vmatprep.subr.mxu0 0.0
        %2319 = vmatpush1.msra.mxu0 0.0
        %2320 = vmatprep.subr.mxu0 0.0
        %2321 = vmatpush1.msra.mxu0 0.0
        %2322 = vmatprep.subr.mxu0 0.0
        %2323 = vmatpush1.msra.mxu0 0.0
        %2324 = vmatprep.subr.mxu0 0.0
        %2325 = vmatpush1.msra.mxu0 0.0
        %2326 = vmatprep.subr.mxu0 0.0
        %2327 = vmatpush1.msra.mxu0 0.0
        %2328 = vmatprep.subr.mxu0 0.0
        %2329 = vmatpush1.msra.mxu0 0.0
        %2330 = vmatprep.subr.mxu0 0.0
        %2331 = vmatpush1.msra.mxu0 0.0
        %2332 = vmatprep.subr.mxu0 0.0
        %2333 = vmatpush1.msra.mxu0 0.0
        %2334 = vmatprep.subr.mxu0 0.0
        %2335 = vmatpush1.msra.mxu0 0.0
        %2336 = vmatprep.subr.mxu0 0.0
        %2337 = vmatpush1.msra.mxu0 0.0
        %2338 = vmatprep.subr.mxu0 0.0
        %2339 = vmatpush1.msra.mxu0 0.0
        %2340 = vmatprep.subr.mxu0 0.0
        %2341 = vmatpush1.msra.mxu0 0.0
        %2342 = vmatprep.subr.mxu0 0.0
        %2343 = vmatpush1.msra.mxu0 0.0
        %2344 = vmatprep.subr.mxu0 0.0
        %2345 = vmatpush1.msra.mxu0 0.0
        %2346 = vmatprep.subr.mxu0 0.0
        %2347 = vmatpush1.msra.mxu0 0.0
        %2348 = vmatprep.subr.mxu0 0.0
        %2349 = vmatpush1.msra.mxu0 0.0
        %2350 = vmatprep.subr.mxu0 0.0
        %2351 = vmatpush1.msra.mxu0 0.0
        %2352 = vmatprep.subr.mxu0 0.0
        %2353 = vmatpush1.msra.mxu0 0.0
        %2354 = vmatprep.subr.mxu0 0.0
        %2355 = vmatpush1.msra.mxu0 0.0
        %2356 = vmatprep.subr.mxu0 0.0
        %2357 = vmatpush1.msra.mxu0 0.0
        %2358 = vmatprep.subr.mxu0 0.0
        %2359 = vmatpush1.msra.mxu0 0.0
        %2360 = vmatprep.subr.mxu0 0.0
        %2361 = vmatpush1.msra.mxu0 0.0
        %2362 = vmatprep.mubr.f32.mxu0 0.0
        %2363 = vmatmul.mubr.f32.gmra.mrb[0].mxu0 %v2139
        %v2364 = vpop.f32.mrb[0].mxu0
        %v2365 = vadd.f32 0.0, %v2364
        %v2366 = vpop.f32.mrb[0].mxu0
        %2367 = vmatprep.mubr.f32.mxu0 0.0
        %2368 = vmatmul.mubr.f32.gmra.mrb[0].mxu0 %v2142
        %v2369 = vpop.f32.mrb[0].mxu0
        %v2370 = vadd.f32 0.0, %v2369
        %v2371 = vpop.f32.mrb[0].mxu0
        %2372 = vdwg.mxu0
        %v2373 = vmul.f32 %v2211, %v530
        %v2374 = vmul.f32 %v2213, %v542
        %v2375 = vmul.f32 %v2288, %v554
        %v2376 = vmul.f32 %v2290, %v566
        %v2377 = vmul.f32 %v2365, %v519
        %v2378 = vmul.f32 %v2217, %v531
        %v2379 = vmul.f32 %v2219, %v543
        %v2380 = vmul.f32 %v2294, %v555
        %v2381 = vmul.f32 %v2296, %v567
        %v2382 = vmul.f32 %v2370, %v521
        %v2383 = vld [vmem:[%s6] sm:$0xff]
        %v2384 = vld [vmem:[%s6 + $0x8] sm:$0xff]
        %v2385 = vld [vmem:[%s6 + $0x10] sm:$0xff]
        %v2386 = vld [vmem:[%s6 + $0x18] sm:$0xff]
        %v2387 = vld [vmem:[%s6 + $0x20] sm:$0xff]
        %v2388 = vld [vmem:[%s6 + $0x28] sm:$0xff]
        %v2389 = vld [vmem:[%s6 + $0x30] sm:$0xff]
        %v2390 = vld [vmem:[%s6 + $0x38] sm:$0xff]
        %v2391 = vld [vmem:[%s6 + $0x40] sm:$0xff]
        %v2392 = vld [vmem:[%s6 + $0x48] sm:$0xff]
        %v2393 = vld [vmem:[%s6 + $0x50] sm:$0xff]
        %v2394 = vld [vmem:[%s6 + $0x58] sm:$0xff]
        %v2395 = vld [vmem:[%s6 + $0x60] sm:$0xff]
        %v2396 = vld [vmem:[%s6 + $0x68] sm:$0xff]
        %v2397 = vld [vmem:[%s6 + $0x70] sm:$0xff]
        %v2398 = vld [vmem:[%s6 + $0x78] sm:$0xff]
        %v2399 = vld [vmem:[%s6 + $0x80] sm:$0xff]
        %v2400 = vld [vmem:[%s6 + $0x88] sm:$0xff]
        %v2401 = vld [vmem:[%s6 + $0x90] sm:$0xff]
        %v2402 = vld [vmem:[%s6 + $0x98] sm:$0xff]
        %v2403 = vld [vmem:[%s6 + $0xa0] sm:$0xff]
        %v2404 = vld [vmem:[%s6 + $0xa8] sm:$0xff]
        %v2405 = vld [vmem:[%s6 + $0xb0] sm:$0xff]
        %v2406 = vld [vmem:[%s6 + $0xb8] sm:$0xff]
        %v2407 = vld [vmem:[%s6 + $0xc0] sm:$0xff]
        %v2408 = vld [vmem:[%s6 + $0xc8] sm:$0xff]
        %v2409 = vld [vmem:[%s6 + $0xd0] sm:$0xff]
        %v2410 = vld [vmem:[%s6 + $0xd8] sm:$0xff]
        %v2411 = vld [vmem:[%s6 + $0xe0] sm:$0xff]
        %v2412 = vld [vmem:[%s6 + $0xe8] sm:$0xff]
        %v2413 = vld [vmem:[%s6 + $0xf0] sm:$0xff]
        %v2414 = vld [vmem:[%s6 + $0xf8] sm:$0xff]
        %v2415 = vld [vmem:[%s6 + $0x100] sm:$0xff]
        %v2416 = vld [vmem:[%s6 + $0x108] sm:$0xff]
        %v2417 = vld [vmem:[%s6 + $0x110] sm:$0xff]
        %v2418 = vld [vmem:[%s6 + $0x118] sm:$0xff]
        %v2419 = vld [vmem:[%s6 + $0x120] sm:$0xff]
        %v2420 = vld [vmem:[%s6 + $0x128] sm:$0xff]
        %v2421 = vld [vmem:[%s6 + $0x130] sm:$0xff]
        %v2422 = vld [vmem:[%s6 + $0x138] sm:$0xff]
        %v2423 = vld [vmem:[%s6 + $0x140] sm:$0xff]
        %v2424 = vld [vmem:[%s6 + $0x148] sm:$0xff]
        %v2425 = vld [vmem:[%s6 + $0x150] sm:$0xff]
        %v2426 = vld [vmem:[%s6 + $0x158] sm:$0xff]
        %v2427 = vld [vmem:[%s6 + $0x160] sm:$0xff]
        %v2428 = vld [vmem:[%s6 + $0x168] sm:$0xff]
        %v2429 = vld [vmem:[%s6 + $0x170] sm:$0xff]
        %v2430 = vld [vmem:[%s6 + $0x178] sm:$0xff]
        %v2431 = vld [vmem:[%s6 + $0x180] sm:$0xff]
        %v2432 = vld [vmem:[%s6 + $0x188] sm:$0xff]
        %v2433 = vld [vmem:[%s6 + $0x190] sm:$0xff]
        %v2434 = vld [vmem:[%s6 + $0x198] sm:$0xff]
        %v2435 = vld [vmem:[%s6 + $0x1a0] sm:$0xff]
        %v2436 = vld [vmem:[%s6 + $0x1a8] sm:$0xff]
        %v2437 = vld [vmem:[%s6 + $0x1b0] sm:$0xff]
        %v2438 = vld [vmem:[%s6 + $0x1b8] sm:$0xff]
        %v2439 = vld [vmem:[%s6 + $0x1c0] sm:$0xff]
        %v2440 = vld [vmem:[%s6 + $0x1c8] sm:$0xff]
        %v2441 = vld [vmem:[%s6 + $0x1d0] sm:$0xff]
        %v2442 = vld [vmem:[%s6 + $0x1d8] sm:$0xff]
        %v2443 = vld [vmem:[%s6 + $0x1e0] sm:$0xff]
        %v2444 = vld [vmem:[%s6 + $0x1e8] sm:$0xff]
        %v2445 = vld [vmem:[%s6 + $0x1f0] sm:$0xff]
        %v2446 = vld [vmem:[%s6 + $0x1f8] sm:$0xff]
        %v2447 = vld [vmem:[%s6 + $0x200] sm:$0xff]
        %v2448 = vld [vmem:[%s6 + $0x208] sm:$0xff]
        %2451 = vrot.lane.b32.xlu0 %v424, 80
        %v2452 = vpop.permute.xlu0 %2451
        %2453 = vrot.lane.b32.xlu0 %v426, 80
        %v2454 = vpop.permute.xlu0 %2453
        %2455 = vrot.lane.b32.xlu0 %v430, 80
        %v2456 = vpop.permute.xlu0 %2455
        %2457 = vrot.lane.b32.xlu0 %v432, 80
        %v2458 = vpop.permute.xlu0 %2457
        %vm2459 = vcmask 654336
        %v2460 = vsel %vm2459, %v2452, %v2454
        %v2461 = vsel %vm2459, %v2456, %v2458
        %v2465 = vsel %vm596, %v2377, 0
        %v2468 = vsel %vm596, %v2382, 0
        %2470 = vmatprep.subr.mxu0 0.0
        %2471 = vmatpush1.msra.mxu0 %v2383
        %2472 = vmatprep.subr.mxu0 0.0
        %2473 = vmatpush1.msra.mxu0 %v2384
        %2474 = vmatprep.subr.mxu0 0.0
        %2475 = vmatpush1.msra.mxu0 %v2385
        %2476 = vmatprep.subr.mxu0 0.0
        %2477 = vmatpush1.msra.mxu0 %v2386
        %2478 = vmatprep.subr.mxu0 0.0
        %2479 = vmatpush1.msra.mxu0 %v2387
        %2480 = vmatprep.subr.mxu0 0.0
        %2481 = vmatpush1.msra.mxu0 %v2388
        %2482 = vmatprep.subr.mxu0 0.0
        %2483 = vmatpush1.msra.mxu0 %v2389
        %2484 = vmatprep.subr.mxu0 0.0
        %2485 = vmatpush1.msra.mxu0 %v2390
        %2486 = vmatprep.subr.mxu0 0.0
        %2487 = vmatpush1.msra.mxu0 %v2391
        %2488 = vmatprep.subr.mxu0 0.0
        %2489 = vmatpush1.msra.mxu0 %v2392
        %2490 = vmatprep.subr.mxu0 0.0
        %2491 = vmatpush1.msra.mxu0 %v2393
        %2492 = vmatprep.subr.mxu0 0.0
        %2493 = vmatpush1.msra.mxu0 %v2394
        %2494 = vmatprep.subr.mxu0 0.0
        %2495 = vmatpush1.msra.mxu0 %v2395
        %2496 = vmatprep.subr.mxu0 0.0
        %2497 = vmatpush1.msra.mxu0 %v2396
        %2498 = vmatprep.subr.mxu0 0.0
        %2499 = vmatpush1.msra.mxu0 %v2397
        %2500 = vmatprep.subr.mxu0 0.0
        %2501 = vmatpush1.msra.mxu0 %v2398
        %2502 = vmatprep.subr.mxu0 0.0
        %2503 = vmatpush1.msra.mxu0 %v2399
        %2504 = vmatprep.subr.mxu0 0.0
        %2505 = vmatpush1.msra.mxu0 %v2400
        %2506 = vmatprep.subr.mxu0 0.0
        %2507 = vmatpush1.msra.mxu0 %v2401
        %2508 = vmatprep.subr.mxu0 0.0
        %2509 = vmatpush1.msra.mxu0 %v2402
        %2510 = vmatprep.subr.mxu0 0.0
        %2511 = vmatpush1.msra.mxu0 %v2403
        %2512 = vmatprep.subr.mxu0 0.0
        %2513 = vmatpush1.msra.mxu0 %v2404
        %2514 = vmatprep.subr.mxu0 0.0
        %2515 = vmatpush1.msra.mxu0 %v2405
        %2516 = vmatprep.subr.mxu0 0.0
        %2517 = vmatpush1.msra.mxu0 %v2406
        %2518 = vmatprep.subr.mxu0 0.0
        %2519 = vmatpush1.msra.mxu0 %v2407
        %2520 = vmatprep.subr.mxu0 0.0
        %2521 = vmatpush1.msra.mxu0 %v2408
        %2522 = vmatprep.subr.mxu0 0.0
        %2523 = vmatpush1.msra.mxu0 %v2409
        %2524 = vmatprep.subr.mxu0 0.0
        %2525 = vmatpush1.msra.mxu0 %v2410
        %2526 = vmatprep.subr.mxu0 0.0
        %2527 = vmatpush1.msra.mxu0 %v2411
        %2528 = vmatprep.subr.mxu0 0.0
        %2529 = vmatpush1.msra.mxu0 %v2412
        %2530 = vmatprep.subr.mxu0 0.0
        %2531 = vmatpush1.msra.mxu0 %v2413
        %2532 = vmatprep.subr.mxu0 0.0
        %2533 = vmatpush1.msra.mxu0 %v2414
        %2534 = vmatprep.mubr.f32.mxu0 %v2374
        %2535 = vmatmul.mubr.f32.gmra.mrb[0].mxu0 %v2373
        %v2536 = vpop.f32.mrb[0].mxu0
        %v2537 = vadd.f32 %v2460, %v2536
        %v2538 = vpop.f32.mrb[0].mxu0
        %2539 = vmatprep.mubr.f32.mxu0 %v2379
        %2540 = vmatmul.mubr.f32.gmra.mrb[0].mxu0 %v2378
        %v2541 = vpop.f32.mrb[0].mxu0
        %v2542 = vadd.f32 %v2461, %v2541
        %v2543 = vpop.f32.mrb[0].mxu0
        %2544 = vdwg.mxu0
        %2545 = vmatprep.subr.mxu0 0.0
        %2546 = vmatpush1.msra.mxu0 %v2415
        %2547 = vmatprep.subr.mxu0 0.0
        %2548 = vmatpush1.msra.mxu0 %v2416
        %2549 = vmatprep.subr.mxu0 0.0
        %2550 = vmatpush1.msra.mxu0 %v2417
        %2551 = vmatprep.subr.mxu0 0.0
        %2552 = vmatpush1.msra.mxu0 %v2418
        %2553 = vmatprep.subr.mxu0 0.0
        %2554 = vmatpush1.msra.mxu0 %v2419
        %2555 = vmatprep.subr.mxu0 0.0
        %2556 = vmatpush1.msra.mxu0 %v2420
        %2557 = vmatprep.subr.mxu0 0.0
        %2558 = vmatpush1.msra.mxu0 %v2421
        %2559 = vmatprep.subr.mxu0 0.0
        %2560 = vmatpush1.msra.mxu0 %v2422
        %2561 = vmatprep.subr.mxu0 0.0
        %2562 = vmatpush1.msra.mxu0 %v2423
        %2563 = vmatprep.subr.mxu0 0.0
        %2564 = vmatpush1.msra.mxu0 %v2424
        %2565 = vmatprep.subr.mxu0 0.0
        %2566 = vmatpush1.msra.mxu0 %v2425
        %2567 = vmatprep.subr.mxu0 0.0
        %2568 = vmatpush1.msra.mxu0 %v2426
        %2569 = vmatprep.subr.mxu0 0.0
        %2570 = vmatpush1.msra.mxu0 %v2427
        %2571 = vmatprep.subr.mxu0 0.0
        %2572 = vmatpush1.msra.mxu0 %v2428
        %2573 = vmatprep.subr.mxu0 0.0
        %2574 = vmatpush1.msra.mxu0 %v2429
        %2575 = vmatprep.subr.mxu0 0.0
        %2576 = vmatpush1.msra.mxu0 %v2430
        %2577 = vmatprep.subr.mxu0 0.0
        %2578 = vmatpush1.msra.mxu0 %v2431
        %2579 = vmatprep.subr.mxu0 0.0
        %2580 = vmatpush1.msra.mxu0 %v2432
        %2581 = vmatprep.subr.mxu0 0.0
        %2582 = vmatpush1.msra.mxu0 %v2433
        %2583 = vmatprep.subr.mxu0 0.0
        %2584 = vmatpush1.msra.mxu0 %v2434
        %2585 = vmatprep.subr.mxu0 0.0
        %2586 = vmatpush1.msra.mxu0 %v2435
        %2587 = vmatprep.subr.mxu0 0.0
        %2588 = vmatpush1.msra.mxu0 %v2436
        %2589 = vmatprep.subr.mxu0 0.0
        %2590 = vmatpush1.msra.mxu0 %v2437
        %2591 = vmatprep.subr.mxu0 0.0
        %2592 = vmatpush1.msra.mxu0 %v2438
        %2593 = vmatprep.subr.mxu0 0.0
        %2594 = vmatpush1.msra.mxu0 %v2439
        %2595 = vmatprep.subr.mxu0 0.0
        %2596 = vmatpush1.msra.mxu0 %v2440
        %2597 = vmatprep.subr.mxu0 0.0
        %2598 = vmatpush1.msra.mxu0 %v2441
        %2599 = vmatprep.subr.mxu0 0.0
        %2600 = vmatpush1.msra.mxu0 %v2442
        %2601 = vmatprep.subr.mxu0 0.0
        %2602 = vmatpush1.msra.mxu0 %v2443
        %2603 = vmatprep.subr.mxu0 0.0
        %2604 = vmatpush1.msra.mxu0 %v2444
        %2605 = vmatprep.subr.mxu0 0.0
        %2606 = vmatpush1.msra.mxu0 %v2445
        %2607 = vmatprep.subr.mxu0 0.0
        %2608 = vmatpush1.msra.mxu0 %v2446
        %2609 = vmatprep.mubr.f32.mxu0 %v2376
        %2610 = vmatmul.mubr.f32.gmra.mrb[0].mxu0 %v2375
        %v2611 = vpop.f32.mrb[0].mxu0
        %v2612 = vadd.f32 %v2537, %v2611
        %v2613 = vpop.f32.mrb[0].mxu0
        %2614 = vmatprep.mubr.f32.mxu0 %v2381
        %2615 = vmatmul.mubr.f32.gmra.mrb[0].mxu0 %v2380
        %v2616 = vpop.f32.mrb[0].mxu0
        %v2617 = vadd.f32 %v2542, %v2616
        %v2618 = vpop.f32.mrb[0].mxu0
        %2619 = vdwg.mxu0
        %2620 = vmatprep.subr.mxu0 0.0
        %2621 = vmatpush1.msra.mxu0 %v2447
        %2622 = vmatprep.subr.mxu0 0.0
        %2623 = vmatpush1.msra.mxu0 %v2448
        %2624 = vmatprep.subr.mxu0 0.0
        %2625 = vmatpush1.msra.mxu0 0.0
        %2626 = vmatprep.subr.mxu0 0.0
        %2627 = vmatpush1.msra.mxu0 0.0
        %2628 = vmatprep.subr.mxu0 0.0
        %2629 = vmatpush1.msra.mxu0 0.0
        %2630 = vmatprep.subr.mxu0 0.0
        %2631 = vmatpush1.msra.mxu0 0.0
        %2632 = vmatprep.subr.mxu0 0.0
        %2633 = vmatpush1.msra.mxu0 0.0
        %2634 = vmatprep.subr.mxu0 0.0
        %2635 = vmatpush1.msra.mxu0 0.0
        %2636 = vmatprep.subr.mxu0 0.0
        %2637 = vmatpush1.msra.mxu0 0.0
        %2638 = vmatprep.subr.mxu0 0.0
        %2639 = vmatpush1.msra.mxu0 0.0
        %2640 = vmatprep.subr.mxu0 0.0
        %2641 = vmatpush1.msra.mxu0 0.0
        %2642 = vmatprep.subr.mxu0 0.0
        %2643 = vmatpush1.msra.mxu0 0.0
        %2644 = vmatprep.subr.mxu0 0.0
        %2645 = vmatpush1.msra.mxu0 0.0
        %2646 = vmatprep.subr.mxu0 0.0
        %2647 = vmatpush1.msra.mxu0 0.0
        %2648 = vmatprep.subr.mxu0 0.0
        %2649 = vmatpush1.msra.mxu0 0.0
        %2650 = vmatprep.subr.mxu0 0.0
        %2651 = vmatpush1.msra.mxu0 0.0
        %2652 = vmatprep.subr.mxu0 0.0
        %2653 = vmatpush1.msra.mxu0 0.0
        %2654 = vmatprep.subr.mxu0 0.0
        %2655 = vmatpush1.msra.mxu0 0.0
        %2656 = vmatprep.subr.mxu0 0.0
        %2657 = vmatpush1.msra.mxu0 0.0
        %2658 = vmatprep.subr.mxu0 0.0
        %2659 = vmatpush1.msra.mxu0 0.0
        %2660 = vmatprep.subr.mxu0 0.0
        %2661 = vmatpush1.msra.mxu0 0.0
        %2662 = vmatprep.subr.mxu0 0.0
        %2663 = vmatpush1.msra.mxu0 0.0
        %2664 = vmatprep.subr.mxu0 0.0
        %2665 = vmatpush1.msra.mxu0 0.0
        %2666 = vmatprep.subr.mxu0 0.0
        %2667 = vmatpush1.msra.mxu0 0.0
        %2668 = vmatprep.subr.mxu0 0.0
        %2669 = vmatpush1.msra.mxu0 0.0
        %2670 = vmatprep.subr.mxu0 0.0
        %2671 = vmatpush1.msra.mxu0 0.0
        %2672 = vmatprep.subr.mxu0 0.0
        %2673 = vmatpush1.msra.mxu0 0.0
        %2674 = vmatprep.subr.mxu0 0.0
        %2675 = vmatpush1.msra.mxu0 0.0
        %2676 = vmatprep.subr.mxu0 0.0
        %2677 = vmatpush1.msra.mxu0 0.0
        %2678 = vmatprep.subr.mxu0 0.0
        %2679 = vmatpush1.msra.mxu0 0.0
        %2680 = vmatprep.subr.mxu0 0.0
        %2681 = vmatpush1.msra.mxu0 0.0
        %2682 = vmatprep.subr.mxu0 0.0
        %2683 = vmatpush1.msra.mxu0 0.0
        %2684 = vmatprep.mubr.f32.mxu0 0.0
        %2685 = vmatmul.mubr.f32.gmra.mrb[0].mxu0 %v2465
        %v2686 = vpop.f32.mrb[0].mxu0
        %v2687 = vadd.f32 %v2612, %v2686
        %v2688 = vpop.f32.mrb[0].mxu0
        %2689 = vmatprep.mubr.f32.mxu0 0.0
        %2690 = vmatmul.mubr.f32.gmra.mrb[0].mxu0 %v2468
        %v2691 = vpop.f32.mrb[0].mxu0
        %v2692 = vadd.f32 %v2617, %v2691
        %v2693 = vpop.f32.mrb[0].mxu0
        %2694 = vdwg.mxu0
        %2695 = vst [vmem:[%s315] sm:$0xff] %v2687
        %2696 = vst [vmem:[%s315 + $0x8] sm:$0xff] %v2692
        %s2697 = sand.u32 %s208, 1
        %s2698 = scalar_lea.sflag [#allocation3], %s2697
        %s2699 = sand.u32 %s208, 1
        %s2700 = smul.addr %s2699, 16
        %s2701 = scalar_lea.vmem [#allocation2], %s2700
        // Predicated region
        $region53: #{tpu_custom_call.1} parent=51 // pred_check
          %p2702 = pneg %p218
        $region54: #{tpu_custom_call.1} parent=51 // pred_check_branch
          %2704 = sbr.rel (%p2702) target = $region56
        $region55: #{tpu_custom_call.1} parent=51 // pred_region
          %s2705 = smul.u32 2, %s22
          %s2707 = ssub.s32 256, 256
          %2708 = vsyncadd %s2698, %s2707
          %s2709 = smul.addr %s2705, 128
          %s2710 = scalar_lea.hbm %s8, %s2709
          %s2711 = sshll.u32 %s2701, 4
          %s2712 = int_to_ptr.vmem [resolvable:$true] %s2711
          %2717 = dma.vmem_to_hbm [thread:$0]  %s2712, 256, %s2710, %s2698, 128, 128, 8
        $region56: #{tpu_custom_call.1} parent=51 // pred_fallthru
          _
      $region52: #{tpu_custom_call.1} parent=5 // pred_fallthru
        _
      %p2718 = scmp.le.s32.totalorder 2, %s17
      // Predicated region
      $region57: #{tpu_custom_call.1} parent=5 // pred_check
        %p2719 = pneg %p2718
      $region58: #{tpu_custom_call.1} parent=5 // pred_check_branch
        %2721 = sbr.rel (%p2719) target = $region60
      $region59: #{tpu_custom_call.1} parent=5 // pred_region
        %s2722 = ssub.s32 %s17, 2
        // Predicated region
        $region61: #{tpu_custom_call.1} parent=59 // pred_check
          %p2723 = pneg %p224
        $region62: #{tpu_custom_call.1} parent=59 // pred_check_branch
          %2725 = sbr.rel (%p2723) target = $region64
        $region63: #{tpu_custom_call.1} parent=59 // pred_region
          %s2726 = sand.u32 %s209, 1
          %s2727 = scalar_lea.sflag [#allocation3], %s2726
          %s2728 = sand.u32 %s209, 1
          %s2729 = smul.addr %s2728, 16
          %s2730 = scalar_lea.vmem [#allocation2], %s2729
          %2731 = dma.done %s2727, 256
        $region64: #{tpu_custom_call.1} parent=59 // pred_fallthru
          _
      $region60: #{tpu_custom_call.1} parent=5 // pred_fallthru
        _
    $region6: #{tpu_custom_call.1} parent=1 // loop_footer
      %s21 = sadd.s32 1, %s17
    $region7: #{tpu_custom_call.1} parent=1 // loop_footer_branch
      %16 = sbr.rel target = $region3
    $region8: #{tpu_custom_call.1} parent=1 // loop_exit
      _
    %2732 = vsyncpa [#allocation3], 1
    %s2733 = scalar_lea.sflag [#allocation3], 1
    %2734 = vsyncpa %s2733, 1

</llo_original>
